<compile_context>
chip_gen: v5e
topology: v5e:2x2
jax: 0.10.0
libtpu: 0.0.40
codegen_flags: <defaults>
</compile_context>

<pallas_src>
import functools

import jax
import jax.numpy as jnp
import numpy as np
from jax import lax
from jax.experimental import pallas as pl
from jax.experimental.pallas import tpu as pltpu


# ----------------------------------------------------------------------------
# Pallas kernel: one LSTM layer, one (time-block x batch-block) slab per step.
# ----------------------------------------------------------------------------
def _lstm_layer_kernel(x_ref, h0_ref, c0_ref, wih_ref, whh_ref, b_ref,
                       out_ref, cT_ref,
                       pre_sc, h_sc, c_sc,
                       *, time_block, batch, hidden, proj_chunks):
    t_blk = pl.program_id(1)

    # A new batch block starts a fresh sequence: load the initial carries.
    @pl.when(t_blk == 0)
    def _():
        h_sc[...] = h0_ref[...]
        c_sc[...] = c0_ref[...]

    mxu_dtype = wih_ref.dtype   # bf16 weights OK on all chips; f32 accumulate.
    H = hidden
    d_in = x_ref.shape[-1]
    bias = b_ref[...]

    # ---- Hoisted input projection (no sequential dependence). Written in a
    # few chunks so recurrence step i only depends on the chunk containing it,
    # letting the scheduler overlap later projection chunks with gate math.
    csz = time_block // proj_chunks
    for ck in range(proj_chunks):
        xc = x_ref[pl.ds(ck * csz, csz)]                       # (csz, NB, D)
        xc2 = xc.reshape(csz * batch, d_in)                    # free when NB%8==0
        pre = (jnp.dot(xc2.astype(mxu_dtype), wih_ref[...],
                       preferred_element_type=jnp.float32) + bias)
        pre_sc[pl.ds(ck * csz, csz)] = pre.reshape(csz, batch, 4 * H)

    # ---- Recurrence: only h @ W_hh stays on the serial chain. Gate columns
    # were permuted host-side to [i | f | o | g] so one sigmoid covers an
    # (NB, 3H) slab and one tanh covers (NB, H).
    # TODO(synk): keep W_hh staged in the MXU across the whole block via
    #             pltpu.matmul_push_rhs / matmul_acc_lhs / matmul_pop.
    # TODO(synk): on v6e/v7x the nonlinearities could run on bf16 pre-acts
    #             (keep c/h f32); kept f32 here to match the f32 reference
    #             (and v5e has no bf16 VPU/EUP).
    def step(i, carry):
        h, c = carry
        gates = pre_sc[i] + jnp.dot(h.astype(mxu_dtype), whh_ref[...],
                                    preferred_element_type=jnp.float32)
        sig = jax.nn.sigmoid(gates[:, :3 * H])
        # TODO(synk): for production sizes make H a multiple of 128 so these
        # per-gate slices are lane-aligned full-tile views.
        i_g = sig[:, 0 * H:1 * H]
        f_g = sig[:, 1 * H:2 * H]
        o_g = sig[:, 2 * H:3 * H]
        g_g = jnp.tanh(gates[:, 3 * H:4 * H])
        c = f_g * c + i_g * g_g
        h = o_g * jnp.tanh(c)
        out_ref[i] = h.astype(out_ref.dtype)   # VMEM-resident block; HBM
        return h, c                            # writeback is one slab/grid step.

    h, c = lax.fori_loop(0, time_block, step, (h_sc[...], c_sc[...]),
                         unroll=True)
    h_sc[...] = h
    c_sc[...] = c
    cT_ref[...] = c                            # constant index over time axis


# ----------------------------------------------------------------------------
# Block-size helpers.
# ----------------------------------------------------------------------------
def _pick_time_block(T, max_tb=16):
    """Largest divisor of T that is <= max_tb.

    NOTE: for prime T > max_tb this degenerates to TB=1 (still correct, but
    defeats the hoisted projection / slab DMAs); pad T upstream for such T.
    """
    tb = 1
    for cand in range(1, min(T, max_tb) + 1):
        if T % cand == 0:
            tb = cand
    return tb


def _pick_batch_block(N, max_nb=256):
    """Largest sublane-aligned (multiple-of-8) divisor of N, else N."""
    best = N
    for cand in range(8, min(N, max_nb) + 1, 8):
        if N % cand == 0:
            best = cand
    return best


def _reorder_gates(w, H):
    """PyTorch gate column order [i|f|g|o] -> [i|f|o|g] (sigmoids contiguous)."""
    return jnp.concatenate(
        [w[..., 0:2 * H], w[..., 3 * H:4 * H], w[..., 2 * H:3 * H]], axis=-1)


# ----------------------------------------------------------------------------
# One-layer wrapper.
# ----------------------------------------------------------------------------
def lstm_layer(x, h0, c0, w_ih, w_hh, b, *, time_block=None, batch_block=None,
               proj_chunks=2):
    """One LSTM layer over the full sequence.

    x: (T, N, D), h0/c0: (N, H), w_ih: (D, 4H), w_hh: (H, 4H), b: (1, 4H)
    returns: out (T, N, H), hT (N, H), cT (N, H)
    """
    T, N, D = x.shape
    H = h0.shape[-1]
    tb = time_block if time_block is not None else _pick_time_block(T)
    nb = batch_block if batch_block is not None else _pick_batch_block(N)
    assert T % tb == 0 and N % nb == 0
    if tb % proj_chunks != 0 or tb == 1:
        proj_chunks = 1

    # Host-side layout prep (pure plumbing, outside the kernel).
    w_ih = _reorder_gates(w_ih, H)
    w_hh = _reorder_gates(w_hh, H)
    b = _reorder_gates(b, H)

    kernel = functools.partial(_lstm_layer_kernel, time_block=tb, batch=nb,
                               hidden=H, proj_chunks=proj_chunks)
    out, cT = pl.pallas_call(
        kernel,
        out_shape=(
            jax.ShapeDtypeStruct((T, N, H), jnp.float32),
            jax.ShapeDtypeStruct((N, H), jnp.float32),
        ),
        grid_spec=pltpu.PrefetchScalarGridSpec(
            num_scalar_prefetch=0,
            grid=(N // nb, T // tb),                  # (batch-parallel, time)
            in_specs=[
                pl.BlockSpec((tb, nb, D), lambda bb, t: (t, bb, 0)),    # x
                pl.BlockSpec((nb, H), lambda bb, t: (bb, 0)),           # h0
                pl.BlockSpec((nb, H), lambda bb, t: (bb, 0)),           # c0
                # TODO(synk): at production D/H sizes add pipeline_mode=
                # pl.Buffered(1) on these constant-index inputs (and use bf16
                # weights) to halve resident-weight VMEM for v7x's 64 MiB.
                pl.BlockSpec((D, 4 * H), lambda bb, t: (0, 0)),         # W_ih
                pl.BlockSpec((H, 4 * H), lambda bb, t: (0, 0)),         # W_hh
                pl.BlockSpec((1, 4 * H), lambda bb, t: (0, 0)),         # bias
            ],
            out_specs=[
                pl.BlockSpec((tb, nb, H), lambda bb, t: (t, bb, 0)),    # out
                pl.BlockSpec((nb, H), lambda bb, t: (bb, 0)),           # cT
            ],
            scratch_shapes=[
                pltpu.VMEM((tb, nb, 4 * H), jnp.float32),   # pre-gates
                pltpu.VMEM((nb, H), jnp.float32),           # h carry
                pltpu.VMEM((nb, H), jnp.float32),           # c carry
            ],
        ),
        compiler_params=pltpu.CompilerParams(
            # batch rows are independent (v7x megacore); time is the recurrence
            dimension_semantics=("parallel", "arbitrary"),
            vmem_limit_bytes=64 * 1024 * 1024,
        ),
    )(x, h0, c0, w_ih, w_hh, b)

    hT = out[-1]   # final hidden state == last output step
    return out, hT, cT


# ----------------------------------------------------------------------------
# Multi-layer forward (matches the PyTorch LSTM module, default config).
# ----------------------------------------------------------------------------
def lstm_forward(x, h0, c0, params):
    """x: (T, N, D); h0/c0: (L, N, H); params: list of (w_ih, w_hh, bias_2d).

    Returns (output (T, N, H), (hT (L, N, H), cT (L, N, H))).
    """
    # TODO(synk): deep/narrow LSTMs could fuse the layer loop into the kernel
    # (wavefront over time) to avoid HBM round-trips of (T, N, H) activations.
    layer_input = x
    next_h, next_c = [], []
    for layer, (w_ih, w_hh, b) in enumerate(params):
        layer_input, hT, cT = lstm_layer(layer_input, h0[layer], c0[layer],
                                         w_ih, w_hh, b)
        next_h.append(hT)
        next_c.append(cT)
    return layer_input, (jnp.stack(next_h, 0), jnp.stack(next_c, 0))


# ----------------------------------------------------------------------------
# Pure-JAX reference (mirrors ProjLSTMCell / LSTM, default config).
# ----------------------------------------------------------------------------
def lstm_forward_ref(x, h0, c0, params):
    T = x.shape[0]
    layer_input = x
    next_h, next_c = [], []
    for layer, (w_ih, w_hh, b) in enumerate(params):
        h, c = h0[layer], c0[layer]
        outs = []
        for t in range(T):
            affine = layer_input[t] @ w_ih + h @ w_hh + b[0]
            ai, af, ag, ao = jnp.split(affine, 4, axis=1)
            i = jax.nn.sigmoid(ai)
            f = jax.nn.sigmoid(af)
            g = jnp.tanh(ag)
            c = f * c + i * g
            o = jax.nn.sigmoid(ao)
            h = o * jnp.tanh(c)
            outs.append(h)
        next_h.append(h)
        next_c.append(c)
        layer_input = jnp.stack(outs, 0)
    return layer_input, (jnp.stack(next_h, 0), jnp.stack(next_c, 0))


def init_params(key, input_size, hidden_size, num_layers):
    """uniform(-stdv, stdv) with stdv = 1/sqrt(H), like init_parameters()."""
    stdv = 1.0 / np.sqrt(hidden_size)
    params = []
    for layer in range(num_layers):
        d = input_size if layer == 0 else hidden_size
        key, k1, k2, k3, k4 = jax.random.split(key, 5)
        w_ih = jax.random.uniform(k1, (d, 4 * hidden_size), jnp.float32,
                                  -stdv, stdv)
        w_hh = jax.random.uniform(k2, (hidden_size, 4 * hidden_size),
                                  jnp.float32, -stdv, stdv)
        b_ih = jax.random.uniform(k3, (4 * hidden_size,), jnp.float32,
                                  -stdv, stdv)
        b_hh = jax.random.uniform(k4, (4 * hidden_size,), jnp.float32,
                                  -stdv, stdv)
        params.append((w_ih, w_hh, (b_ih + b_hh)[None, :]))
    return params


if __name__ == "__main__":
    # N=8 keeps f32 sublanes full; T=32 with TB=16 exercises the time-blocked
    # grid carry; one batch block (NB=8) at this size.
    T, N, D, H, L = 32, 8, 16, 32, 2

    key = jax.random.PRNGKey(0)
    kx, kh, kc, kp = jax.random.split(key, 4)
    x = jax.random.normal(kx, (T, N, D), jnp.float32)
    h0 = jax.random.normal(kh, (L, N, H), jnp.float32)
    c0 = jax.random.normal(kc, (L, N, H), jnp.float32)
    params = init_params(kp, D, H, L)

    out, (hT, cT) = lstm_forward(x, h0, c0, params)
    jax.block_until_ready((out, hT, cT))

    out_r, (hT_r, cT_r) = lstm_forward_ref(x, h0, c0, params)
    np.testing.assert_allclose(np.asarray(out), np.asarray(out_r),
                               rtol=1e-4, atol=1e-4)
    np.testing.assert_allclose(np.asarray(hT), np.asarray(hT_r),
                               rtol=1e-4, atol=1e-4)
    np.testing.assert_allclose(np.asarray(cT), np.asarray(cT_r),
                               rtol=1e-4, atol=1e-4)

    print("KERNEL_OK")
</pallas_src>

<mosaic_0001>
module attributes {stable_mosaic.version = 11 : i64} {
  func.func @_lstm_layer_kernel(%arg0: i32, %arg1: i32, %arg2: memref<16x8x16xf32, #tpu.memory_space<vmem>>, %arg3: memref<8x32xf32, #tpu.memory_space<vmem>>, %arg4: memref<8x32xf32, #tpu.memory_space<vmem>>, %arg5: memref<16x128xf32, #tpu.memory_space<vmem>>, %arg6: memref<32x128xf32, #tpu.memory_space<vmem>>, %arg7: memref<1x128xf32, #tpu.memory_space<vmem>>, %arg8: memref<16x8x32xf32, #tpu.memory_space<vmem>>, %arg9: memref<8x32xf32, #tpu.memory_space<vmem>>, %arg10: memref<16x8x128xf32, #tpu.memory_space<vmem>>, %arg11: memref<8x32xf32, #tpu.memory_space<vmem>>, %arg12: memref<8x32xf32, #tpu.memory_space<vmem>>) attributes {dimension_semantics = [#tpu.dimension_semantics<parallel>, #tpu.dimension_semantics<arbitrary>], iteration_bounds = array<i64: 1, 2>, scalar_prefetch = 0 : i64, scratch_operands = 3 : i64, tpu.core_type = #tpu.core_type<tc>, window_params = [{transform_indices = @transform_0, window_bounds = array<i64: 16, 8, 16>}, {transform_indices = @transform_1, window_bounds = array<i64: 8, 32>}, {transform_indices = @transform_2, window_bounds = array<i64: 8, 32>}, {pipeline_mode = #tpu.pipeline_mode<synchronous>, transform_indices = @transform_3, window_bounds = array<i64: 16, 128>}, {pipeline_mode = #tpu.pipeline_mode<synchronous>, transform_indices = @transform_4, window_bounds = array<i64: 32, 128>}, {pipeline_mode = #tpu.pipeline_mode<synchronous>, transform_indices = @transform_5, window_bounds = array<i64: 1, 128>}, {transform_indices = @transform_6, window_bounds = array<i64: 16, 8, 32>}, {transform_indices = @transform_7, window_bounds = array<i64: 8, 32>}]} {
    %c0_i32 = arith.constant 0 : i32
    %0 = arith.cmpi eq, %arg1, %c0_i32 : i32
    %1 = arith.extui %0 : i1 to i32
    %c0_i32_0 = arith.constant 0 : i32
    %2 = arith.cmpi ne, %1, %c0_i32_0 : i32
    scf.if %2 {
      %c0_157 = arith.constant 0 : index
      %c0_158 = arith.constant 0 : index
      %441 = vector.load %arg3[%c0_157, %c0_158] : memref<8x32xf32, #tpu.memory_space<vmem>>, vector<8x32xf32>
      %c0_159 = arith.constant 0 : index
      %c0_160 = arith.constant 0 : index
      %442 = vector.load %arg11[%c0_159, %c0_160] : memref<8x32xf32, #tpu.memory_space<vmem>>, vector<8x32xf32>
      tpu.vector_store %arg11[%c0_159, %c0_160], %441 {strides = array<i32>} : memref<8x32xf32, #tpu.memory_space<vmem>>, vector<8x32xf32>,
      %c0_161 = arith.constant 0 : index
      %c0_162 = arith.constant 0 : index
      %443 = vector.load %arg4[%c0_161, %c0_162] : memref<8x32xf32, #tpu.memory_space<vmem>>, vector<8x32xf32>
      %c0_163 = arith.constant 0 : index
      %c0_164 = arith.constant 0 : index
      %444 = vector.load %arg12[%c0_163, %c0_164] : memref<8x32xf32, #tpu.memory_space<vmem>>, vector<8x32xf32>
      tpu.vector_store %arg12[%c0_163, %c0_164], %443 {strides = array<i32>} : memref<8x32xf32, #tpu.memory_space<vmem>>, vector<8x32xf32>,
    } else {
    }
    %c0 = arith.constant 0 : index
    %c0_1 = arith.constant 0 : index
    %3 = vector.load %arg7[%c0, %c0_1] : memref<1x128xf32, #tpu.memory_space<vmem>>, vector<1x128xf32>
    %c0_2 = arith.constant 0 : index
    %c0_3 = arith.constant 0 : index
    %c0_4 = arith.constant 0 : index
    %4 = vector.load %arg2[%c0_2, %c0_3, %c0_4] : memref<16x8x16xf32, #tpu.memory_space<vmem>>, vector<8x8x16xf32>
    %5 = vector.shape_cast %4 : vector<8x8x16xf32> to vector<64x16xf32>
    %c0_5 = arith.constant 0 : index
    %c0_6 = arith.constant 0 : index
    %6 = vector.load %arg5[%c0_5, %c0_6] : memref<16x128xf32, #tpu.memory_space<vmem>>, vector<16x128xf32>
    %cst = arith.constant dense<0.000000e+00> : vector<64x128xf32>
    %7 = tpu.matmul %5, %6, %cst {dimension_numbers = #tpu.dot_dimension_numbers<[1], [0], [0], [1], [0, 0, 1, 1], [], []>} : vector<64x16xf32>, vector<16x128xf32>, vector<64x128xf32> -> vector<64x128xf32>
    %8 = vector.broadcast %3 : vector<1x128xf32> to vector<64x128xf32>
    %9 = arith.addf %7, %8 : vector<64x128xf32>
    %10 = vector.shape_cast %9 : vector<64x128xf32> to vector<8x8x128xf32>
    %c0_7 = arith.constant 0 : index
    %c0_8 = arith.constant 0 : index
    %c0_9 = arith.constant 0 : index
    %11 = vector.load %arg10[%c0_7, %c0_8, %c0_9] : memref<16x8x128xf32, #tpu.memory_space<vmem>>, vector<8x8x128xf32>
    tpu.vector_store %arg10[%c0_7, %c0_8, %c0_9], %10 {strides = array<i32>} : memref<16x8x128xf32, #tpu.memory_space<vmem>>, vector<8x8x128xf32>,
    %c8 = arith.constant 8 : index
    %c0_10 = arith.constant 0 : index
    %c0_11 = arith.constant 0 : index
    %12 = vector.load %arg2[%c8, %c0_10, %c0_11] : memref<16x8x16xf32, #tpu.memory_space<vmem>>, vector<8x8x16xf32>
    %13 = vector.shape_cast %12 : vector<8x8x16xf32> to vector<64x16xf32>
    %c0_12 = arith.constant 0 : index
    %c0_13 = arith.constant 0 : index
    %14 = vector.load %arg5[%c0_12, %c0_13] : memref<16x128xf32, #tpu.memory_space<vmem>>, vector<16x128xf32>
    %cst_14 = arith.constant dense<0.000000e+00> : vector<64x128xf32>
    %15 = tpu.matmul %13, %14, %cst_14 {dimension_numbers = #tpu.dot_dimension_numbers<[1], [0], [0], [1], [0, 0, 1, 1], [], []>} : vector<64x16xf32>, vector<16x128xf32>, vector<64x128xf32> -> vector<64x128xf32>
    %16 = vector.broadcast %3 : vector<1x128xf32> to vector<64x128xf32>
    %17 = arith.addf %15, %16 : vector<64x128xf32>
    %18 = vector.shape_cast %17 : vector<64x128xf32> to vector<8x8x128xf32>
    %c8_15 = arith.constant 8 : index
    %c0_16 = arith.constant 0 : index
    %c0_17 = arith.constant 0 : index
    %19 = vector.load %arg10[%c8_15, %c0_16, %c0_17] : memref<16x8x128xf32, #tpu.memory_space<vmem>>, vector<8x8x128xf32>
    tpu.vector_store %arg10[%c8_15, %c0_16, %c0_17], %18 {strides = array<i32>} : memref<16x8x128xf32, #tpu.memory_space<vmem>>, vector<8x8x128xf32>,
    %c0_18 = arith.constant 0 : index
    %c0_19 = arith.constant 0 : index
    %20 = vector.load %arg11[%c0_18, %c0_19] : memref<8x32xf32, #tpu.memory_space<vmem>>, vector<8x32xf32>
    %c0_20 = arith.constant 0 : index
    %c0_21 = arith.constant 0 : index
    %21 = vector.load %arg12[%c0_20, %c0_21] : memref<8x32xf32, #tpu.memory_space<vmem>>, vector<8x32xf32>
    %c0_i32_22 = arith.constant 0 : i32
    %22 = arith.index_cast %c0_i32_22 : i32 to index
    %c0_23 = arith.constant 0 : index
    %c0_24 = arith.constant 0 : index
    %23 = vector.load %arg10[%22, %c0_23, %c0_24] : memref<16x8x128xf32, #tpu.memory_space<vmem>>, vector<1x8x128xf32>
    %24 = vector.shape_cast %23 : vector<1x8x128xf32> to vector<8x128xf32>
    %c0_25 = arith.constant 0 : index
    %c0_26 = arith.constant 0 : index
    %25 = vector.load %arg6[%c0_25, %c0_26] : memref<32x128xf32, #tpu.memory_space<vmem>>, vector<32x128xf32>
    %cst_27 = arith.constant dense<0.000000e+00> : vector<8x128xf32>
    %26 = tpu.matmul %20, %25, %cst_27 {dimension_numbers = #tpu.dot_dimension_numbers<[1], [0], [0], [1], [0, 0, 1, 1], [], []>} : vector<8x32xf32>, vector<32x128xf32>, vector<8x128xf32> -> vector<8x128xf32>
    %27 = arith.addf %24, %26 : vector<8x128xf32>
    %28 = vector.extract_strided_slice %27 {offsets = [0, 0], sizes = [8, 96], strides = [1, 1]} : vector<8x128xf32> to vector<8x96xf32>
    %29 = arith.negf %28 : vector<8x96xf32>
    %30 = math.exp %29 : vector<8x96xf32>
    %cst_28 = arith.constant 1.000000e+00 : f32
    %31 = vector.broadcast %cst_28 : f32 to vector<8x96xf32>
    %32 = arith.addf %31, %30 : vector<8x96xf32>
    %33 = arith.divf %31, %32 : vector<8x96xf32>
    %34 = vector.extract_strided_slice %33 {offsets = [0, 0], sizes = [8, 32], strides = [1, 1]} : vector<8x96xf32> to vector<8x32xf32>
    %35 = vector.extract_strided_slice %33 {offsets = [0, 32], sizes = [8, 32], strides = [1, 1]} : vector<8x96xf32> to vector<8x32xf32>
    %36 = vector.extract_strided_slice %33 {offsets = [0, 64], sizes = [8, 32], strides = [1, 1]} : vector<8x96xf32> to vector<8x32xf32>
    %37 = vector.extract_strided_slice %27 {offsets = [0, 96], sizes = [8, 32], strides = [1, 1]} : vector<8x128xf32> to vector<8x32xf32>
    %38 = math.tanh %37 : vector<8x32xf32>
    %39 = arith.mulf %35, %21 : vector<8x32xf32>
    %40 = arith.mulf %34, %38 : vector<8x32xf32>
    %41 = arith.addf %39, %40 : vector<8x32xf32>
    %42 = math.tanh %41 : vector<8x32xf32>
    %43 = arith.mulf %36, %42 : vector<8x32xf32>
    %44 = arith.index_cast %c0_i32_22 : i32 to index
    %c0_29 = arith.constant 0 : index
    %c0_30 = arith.constant 0 : index
    %45 = vector.load %arg8[%44, %c0_29, %c0_30] : memref<16x8x32xf32, #tpu.memory_space<vmem>>, vector<1x8x32xf32>
    %46 = vector.shape_cast %45 : vector<1x8x32xf32> to vector<8x32xf32>
    %47 = vector.shape_cast %43 : vector<8x32xf32> to vector<1x8x32xf32>
    tpu.vector_store %arg8[%44, %c0_29, %c0_30], %47 {strides = array<i32>} : memref<16x8x32xf32, #tpu.memory_space<vmem>>, vector<1x8x32xf32>,
    %c1_i32 = arith.constant 1 : i32
    %48 = arith.index_cast %c1_i32 : i32 to index
    %c0_31 = arith.constant 0 : index
    %c0_32 = arith.constant 0 : index
    %49 = vector.load %arg10[%48, %c0_31, %c0_32] : memref<16x8x128xf32, #tpu.memory_space<vmem>>, vector<1x8x128xf32>
    %50 = vector.shape_cast %49 : vector<1x8x128xf32> to vector<8x128xf32>
    %c0_33 = arith.constant 0 : index
    %c0_34 = arith.constant 0 : index
    %51 = vector.load %arg6[%c0_33, %c0_34] : memref<32x128xf32, #tpu.memory_space<vmem>>, vector<32x128xf32>
    %cst_35 = arith.constant dense<0.000000e+00> : vector<8x128xf32>
    %52 = tpu.matmul %43, %51, %cst_35 {dimension_numbers = #tpu.dot_dimension_numbers<[1], [0], [0], [1], [0, 0, 1, 1], [], []>} : vector<8x32xf32>, vector<32x128xf32>, vector<8x128xf32> -> vector<8x128xf32>
    %53 = arith.addf %50, %52 : vector<8x128xf32>
    %54 = vector.extract_strided_slice %53 {offsets = [0, 0], sizes = [8, 96], strides = [1, 1]} : vector<8x128xf32> to vector<8x96xf32>
    %55 = arith.negf %54 : vector<8x96xf32>
    %56 = math.exp %55 : vector<8x96xf32>
    %cst_36 = arith.constant 1.000000e+00 : f32
    %57 = vector.broadcast %cst_36 : f32 to vector<8x96xf32>
    %58 = arith.addf %57, %56 : vector<8x96xf32>
    %59 = arith.divf %57, %58 : vector<8x96xf32>
    %60 = vector.extract_strided_slice %59 {offsets = [0, 0], sizes = [8, 32], strides = [1, 1]} : vector<8x96xf32> to vector<8x32xf32>
    %61 = vector.extract_strided_slice %59 {offsets = [0, 32], sizes = [8, 32], strides = [1, 1]} : vector<8x96xf32> to vector<8x32xf32>
    %62 = vector.extract_strided_slice %59 {offsets = [0, 64], sizes = [8, 32], strides = [1, 1]} : vector<8x96xf32> to vector<8x32xf32>
    %63 = vector.extract_strided_slice %53 {offsets = [0, 96], sizes = [8, 32], strides = [1, 1]} : vector<8x128xf32> to vector<8x32xf32>
    %64 = math.tanh %63 : vector<8x32xf32>
    %65 = arith.mulf %61, %41 : vector<8x32xf32>
    %66 = arith.mulf %60, %64 : vector<8x32xf32>
    %67 = arith.addf %65, %66 : vector<8x32xf32>
    %68 = math.tanh %67 : vector<8x32xf32>
    %69 = arith.mulf %62, %68 : vector<8x32xf32>
    %70 = arith.index_cast %c1_i32 : i32 to index
    %c0_37 = arith.constant 0 : index
    %c0_38 = arith.constant 0 : index
    %71 = vector.load %arg8[%70, %c0_37, %c0_38] : memref<16x8x32xf32, #tpu.memory_space<vmem>>, vector<1x8x32xf32>
    %72 = vector.shape_cast %71 : vector<1x8x32xf32> to vector<8x32xf32>
    %73 = vector.shape_cast %69 : vector<8x32xf32> to vector<1x8x32xf32>
    tpu.vector_store %arg8[%70, %c0_37, %c0_38], %73 {strides = array<i32>} : memref<16x8x32xf32, #tpu.memory_space<vmem>>, vector<1x8x32xf32>,
    %c2_i32 = arith.constant 2 : i32
    %74 = arith.index_cast %c2_i32 : i32 to index
    %c0_39 = arith.constant 0 : index
    %c0_40 = arith.constant 0 : index
    %75 = vector.load %arg10[%74, %c0_39, %c0_40] : memref<16x8x128xf32, #tpu.memory_space<vmem>>, vector<1x8x128xf32>
    %76 = vector.shape_cast %75 : vector<1x8x128xf32> to vector<8x128xf32>
    %c0_41 = arith.constant 0 : index
    %c0_42 = arith.constant 0 : index
    %77 = vector.load %arg6[%c0_41, %c0_42] : memref<32x128xf32, #tpu.memory_space<vmem>>, vector<32x128xf32>
    %cst_43 = arith.constant dense<0.000000e+00> : vector<8x128xf32>
    %78 = tpu.matmul %69, %77, %cst_43 {dimension_numbers = #tpu.dot_dimension_numbers<[1], [0], [0], [1], [0, 0, 1, 1], [], []>} : vector<8x32xf32>, vector<32x128xf32>, vector<8x128xf32> -> vector<8x128xf32>
    %79 = arith.addf %76, %78 : vector<8x128xf32>
    %80 = vector.extract_strided_slice %79 {offsets = [0, 0], sizes = [8, 96], strides = [1, 1]} : vector<8x128xf32> to vector<8x96xf32>
    %81 = arith.negf %80 : vector<8x96xf32>
    %82 = math.exp %81 : vector<8x96xf32>
    %cst_44 = arith.constant 1.000000e+00 : f32
    %83 = vector.broadcast %cst_44 : f32 to vector<8x96xf32>
    %84 = arith.addf %83, %82 : vector<8x96xf32>
    %85 = arith.divf %83, %84 : vector<8x96xf32>
    %86 = vector.extract_strided_slice %85 {offsets = [0, 0], sizes = [8, 32], strides = [1, 1]} : vector<8x96xf32> to vector<8x32xf32>
    %87 = vector.extract_strided_slice %85 {offsets = [0, 32], sizes = [8, 32], strides = [1, 1]} : vector<8x96xf32> to vector<8x32xf32>
    %88 = vector.extract_strided_slice %85 {offsets = [0, 64], sizes = [8, 32], strides = [1, 1]} : vector<8x96xf32> to vector<8x32xf32>
    %89 = vector.extract_strided_slice %79 {offsets = [0, 96], sizes = [8, 32], strides = [1, 1]} : vector<8x128xf32> to vector<8x32xf32>
    %90 = math.tanh %89 : vector<8x32xf32>
    %91 = arith.mulf %87, %67 : vector<8x32xf32>
    %92 = arith.mulf %86, %90 : vector<8x32xf32>
    %93 = arith.addf %91, %92 : vector<8x32xf32>
    %94 = math.tanh %93 : vector<8x32xf32>
    %95 = arith.mulf %88, %94 : vector<8x32xf32>
    %96 = arith.index_cast %c2_i32 : i32 to index
    %c0_45 = arith.constant 0 : index
    %c0_46 = arith.constant 0 : index
    %97 = vector.load %arg8[%96, %c0_45, %c0_46] : memref<16x8x32xf32, #tpu.memory_space<vmem>>, vector<1x8x32xf32>
    %98 = vector.shape_cast %97 : vector<1x8x32xf32> to vector<8x32xf32>
    %99 = vector.shape_cast %95 : vector<8x32xf32> to vector<1x8x32xf32>
    tpu.vector_store %arg8[%96, %c0_45, %c0_46], %99 {strides = array<i32>} : memref<16x8x32xf32, #tpu.memory_space<vmem>>, vector<1x8x32xf32>,
    %c3_i32 = arith.constant 3 : i32
    %100 = arith.index_cast %c3_i32 : i32 to index
    %c0_47 = arith.constant 0 : index
    %c0_48 = arith.constant 0 : index
    %101 = vector.load %arg10[%100, %c0_47, %c0_48] : memref<16x8x128xf32, #tpu.memory_space<vmem>>, vector<1x8x128xf32>
    %102 = vector.shape_cast %101 : vector<1x8x128xf32> to vector<8x128xf32>
    %c0_49 = arith.constant 0 : index
    %c0_50 = arith.constant 0 : index
    %103 = vector.load %arg6[%c0_49, %c0_50] : memref<32x128xf32, #tpu.memory_space<vmem>>, vector<32x128xf32>
    %cst_51 = arith.constant dense<0.000000e+00> : vector<8x128xf32>
    %104 = tpu.matmul %95, %103, %cst_51 {dimension_numbers = #tpu.dot_dimension_numbers<[1], [0], [0], [1], [0, 0, 1, 1], [], []>} : vector<8x32xf32>, vector<32x128xf32>, vector<8x128xf32> -> vector<8x128xf32>
    %105 = arith.addf %102, %104 : vector<8x128xf32>
    %106 = vector.extract_strided_slice %105 {offsets = [0, 0], sizes = [8, 96], strides = [1, 1]} : vector<8x128xf32> to vector<8x96xf32>
    %107 = arith.negf %106 : vector<8x96xf32>
    %108 = math.exp %107 : vector<8x96xf32>
    %cst_52 = arith.constant 1.000000e+00 : f32
    %109 = vector.broadcast %cst_52 : f32 to vector<8x96xf32>
    %110 = arith.addf %109, %108 : vector<8x96xf32>
    %111 = arith.divf %109, %110 : vector<8x96xf32>
    %112 = vector.extract_strided_slice %111 {offsets = [0, 0], sizes = [8, 32], strides = [1, 1]} : vector<8x96xf32> to vector<8x32xf32>
    %113 = vector.extract_strided_slice %111 {offsets = [0, 32], sizes = [8, 32], strides = [1, 1]} : vector<8x96xf32> to vector<8x32xf32>
    %114 = vector.extract_strided_slice %111 {offsets = [0, 64], sizes = [8, 32], strides = [1, 1]} : vector<8x96xf32> to vector<8x32xf32>
    %115 = vector.extract_strided_slice %105 {offsets = [0, 96], sizes = [8, 32], strides = [1, 1]} : vector<8x128xf32> to vector<8x32xf32>
    %116 = math.tanh %115 : vector<8x32xf32>
    %117 = arith.mulf %113, %93 : vector<8x32xf32>
    %118 = arith.mulf %112, %116 : vector<8x32xf32>
    %119 = arith.addf %117, %118 : vector<8x32xf32>
    %120 = math.tanh %119 : vector<8x32xf32>
    %121 = arith.mulf %114, %120 : vector<8x32xf32>
    %122 = arith.index_cast %c3_i32 : i32 to index
    %c0_53 = arith.constant 0 : index
    %c0_54 = arith.constant 0 : index
    %123 = vector.load %arg8[%122, %c0_53, %c0_54] : memref<16x8x32xf32, #tpu.memory_space<vmem>>, vector<1x8x32xf32>
    %124 = vector.shape_cast %123 : vector<1x8x32xf32> to vector<8x32xf32>
    %125 = vector.shape_cast %121 : vector<8x32xf32> to vector<1x8x32xf32>
    tpu.vector_store %arg8[%122, %c0_53, %c0_54], %125 {strides = array<i32>} : memref<16x8x32xf32, #tpu.memory_space<vmem>>, vector<1x8x32xf32>,
    %c4_i32 = arith.constant 4 : i32
    %126 = arith.index_cast %c4_i32 : i32 to index
    %c0_55 = arith.constant 0 : index
    %c0_56 = arith.constant 0 : index
    %127 = vector.load %arg10[%126, %c0_55, %c0_56] : memref<16x8x128xf32, #tpu.memory_space<vmem>>, vector<1x8x128xf32>
    %128 = vector.shape_cast %127 : vector<1x8x128xf32> to vector<8x128xf32>
    %c0_57 = arith.constant 0 : index
    %c0_58 = arith.constant 0 : index
    %129 = vector.load %arg6[%c0_57, %c0_58] : memref<32x128xf32, #tpu.memory_space<vmem>>, vector<32x128xf32>
    %cst_59 = arith.constant dense<0.000000e+00> : vector<8x128xf32>
    %130 = tpu.matmul %121, %129, %cst_59 {dimension_numbers = #tpu.dot_dimension_numbers<[1], [0], [0], [1], [0, 0, 1, 1], [], []>} : vector<8x32xf32>, vector<32x128xf32>, vector<8x128xf32> -> vector<8x128xf32>
    %131 = arith.addf %128, %130 : vector<8x128xf32>
    %132 = vector.extract_strided_slice %131 {offsets = [0, 0], sizes = [8, 96], strides = [1, 1]} : vector<8x128xf32> to vector<8x96xf32>
    %133 = arith.negf %132 : vector<8x96xf32>
    %134 = math.exp %133 : vector<8x96xf32>
    %cst_60 = arith.constant 1.000000e+00 : f32
    %135 = vector.broadcast %cst_60 : f32 to vector<8x96xf32>
    %136 = arith.addf %135, %134 : vector<8x96xf32>
    %137 = arith.divf %135, %136 : vector<8x96xf32>
    %138 = vector.extract_strided_slice %137 {offsets = [0, 0], sizes = [8, 32], strides = [1, 1]} : vector<8x96xf32> to vector<8x32xf32>
    %139 = vector.extract_strided_slice %137 {offsets = [0, 32], sizes = [8, 32], strides = [1, 1]} : vector<8x96xf32> to vector<8x32xf32>
    %140 = vector.extract_strided_slice %137 {offsets = [0, 64], sizes = [8, 32], strides = [1, 1]} : vector<8x96xf32> to vector<8x32xf32>
    %141 = vector.extract_strided_slice %131 {offsets = [0, 96], sizes = [8, 32], strides = [1, 1]} : vector<8x128xf32> to vector<8x32xf32>
    %142 = math.tanh %141 : vector<8x32xf32>
    %143 = arith.mulf %139, %119 : vector<8x32xf32>
    %144 = arith.mulf %138, %142 : vector<8x32xf32>
    %145 = arith.addf %143, %144 : vector<8x32xf32>
    %146 = math.tanh %145 : vector<8x32xf32>
    %147 = arith.mulf %140, %146 : vector<8x32xf32>
    %148 = arith.index_cast %c4_i32 : i32 to index
    %c0_61 = arith.constant 0 : index
    %c0_62 = arith.constant 0 : index
    %149 = vector.load %arg8[%148, %c0_61, %c0_62] : memref<16x8x32xf32, #tpu.memory_space<vmem>>, vector<1x8x32xf32>
    %150 = vector.shape_cast %149 : vector<1x8x32xf32> to vector<8x32xf32>
    %151 = vector.shape_cast %147 : vector<8x32xf32> to vector<1x8x32xf32>
    tpu.vector_store %arg8[%148, %c0_61, %c0_62], %151 {strides = array<i32>} : memref<16x8x32xf32, #tpu.memory_space<vmem>>, vector<1x8x32xf32>,
    %c5_i32 = arith.constant 5 : i32
    %152 = arith.index_cast %c5_i32 : i32 to index
    %c0_63 = arith.constant 0 : index
    %c0_64 = arith.constant 0 : index
    %153 = vector.load %arg10[%152, %c0_63, %c0_64] : memref<16x8x128xf32, #tpu.memory_space<vmem>>, vector<1x8x128xf32>
    %154 = vector.shape_cast %153 : vector<1x8x128xf32> to vector<8x128xf32>
    %c0_65 = arith.constant 0 : index
    %c0_66 = arith.constant 0 : index
    %155 = vector.load %arg6[%c0_65, %c0_66] : memref<32x128xf32, #tpu.memory_space<vmem>>, vector<32x128xf32>
    %cst_67 = arith.constant dense<0.000000e+00> : vector<8x128xf32>
    %156 = tpu.matmul %147, %155, %cst_67 {dimension_numbers = #tpu.dot_dimension_numbers<[1], [0], [0], [1], [0, 0, 1, 1], [], []>} : vector<8x32xf32>, vector<32x128xf32>, vector<8x128xf32> -> vector<8x128xf32>
    %157 = arith.addf %154, %156 : vector<8x128xf32>
    %158 = vector.extract_strided_slice %157 {offsets = [0, 0], sizes = [8, 96], strides = [1, 1]} : vector<8x128xf32> to vector<8x96xf32>
    %159 = arith.negf %158 : vector<8x96xf32>
    %160 = math.exp %159 : vector<8x96xf32>
    %cst_68 = arith.constant 1.000000e+00 : f32
    %161 = vector.broadcast %cst_68 : f32 to vector<8x96xf32>
    %162 = arith.addf %161, %160 : vector<8x96xf32>
    %163 = arith.divf %161, %162 : vector<8x96xf32>
    %164 = vector.extract_strided_slice %163 {offsets = [0, 0], sizes = [8, 32], strides = [1, 1]} : vector<8x96xf32> to vector<8x32xf32>
    %165 = vector.extract_strided_slice %163 {offsets = [0, 32], sizes = [8, 32], strides = [1, 1]} : vector<8x96xf32> to vector<8x32xf32>
    %166 = vector.extract_strided_slice %163 {offsets = [0, 64], sizes = [8, 32], strides = [1, 1]} : vector<8x96xf32> to vector<8x32xf32>
    %167 = vector.extract_strided_slice %157 {offsets = [0, 96], sizes = [8, 32], strides = [1, 1]} : vector<8x128xf32> to vector<8x32xf32>
    %168 = math.tanh %167 : vector<8x32xf32>
    %169 = arith.mulf %165, %145 : vector<8x32xf32>
    %170 = arith.mulf %164, %168 : vector<8x32xf32>
    %171 = arith.addf %169, %170 : vector<8x32xf32>
    %172 = math.tanh %171 : vector<8x32xf32>
    %173 = arith.mulf %166, %172 : vector<8x32xf32>
    %174 = arith.index_cast %c5_i32 : i32 to index
    %c0_69 = arith.constant 0 : index
    %c0_70 = arith.constant 0 : index
    %175 = vector.load %arg8[%174, %c0_69, %c0_70] : memref<16x8x32xf32, #tpu.memory_space<vmem>>, vector<1x8x32xf32>
    %176 = vector.shape_cast %175 : vector<1x8x32xf32> to vector<8x32xf32>
    %177 = vector.shape_cast %173 : vector<8x32xf32> to vector<1x8x32xf32>
    tpu.vector_store %arg8[%174, %c0_69, %c0_70], %177 {strides = array<i32>} : memref<16x8x32xf32, #tpu.memory_space<vmem>>, vector<1x8x32xf32>,
    %c6_i32 = arith.constant 6 : i32
    %178 = arith.index_cast %c6_i32 : i32 to index
    %c0_71 = arith.constant 0 : index
    %c0_72 = arith.constant 0 : index
    %179 = vector.load %arg10[%178, %c0_71, %c0_72] : memref<16x8x128xf32, #tpu.memory_space<vmem>>, vector<1x8x128xf32>
    %180 = vector.shape_cast %179 : vector<1x8x128xf32> to vector<8x128xf32>
    %c0_73 = arith.constant 0 : index
    %c0_74 = arith.constant 0 : index
    %181 = vector.load %arg6[%c0_73, %c0_74] : memref<32x128xf32, #tpu.memory_space<vmem>>, vector<32x128xf32>
    %cst_75 = arith.constant dense<0.000000e+00> : vector<8x128xf32>
    %182 = tpu.matmul %173, %181, %cst_75 {dimension_numbers = #tpu.dot_dimension_numbers<[1], [0], [0], [1], [0, 0, 1, 1], [], []>} : vector<8x32xf32>, vector<32x128xf32>, vector<8x128xf32> -> vector<8x128xf32>
    %183 = arith.addf %180, %182 : vector<8x128xf32>
    %184 = vector.extract_strided_slice %183 {offsets = [0, 0], sizes = [8, 96], strides = [1, 1]} : vector<8x128xf32> to vector<8x96xf32>
    %185 = arith.negf %184 : vector<8x96xf32>
    %186 = math.exp %185 : vector<8x96xf32>
    %cst_76 = arith.constant 1.000000e+00 : f32
    %187 = vector.broadcast %cst_76 : f32 to vector<8x96xf32>
    %188 = arith.addf %187, %186 : vector<8x96xf32>
    %189 = arith.divf %187, %188 : vector<8x96xf32>
    %190 = vector.extract_strided_slice %189 {offsets = [0, 0], sizes = [8, 32], strides = [1, 1]} : vector<8x96xf32> to vector<8x32xf32>
    %191 = vector.extract_strided_slice %189 {offsets = [0, 32], sizes = [8, 32], strides = [1, 1]} : vector<8x96xf32> to vector<8x32xf32>
    %192 = vector.extract_strided_slice %189 {offsets = [0, 64], sizes = [8, 32], strides = [1, 1]} : vector<8x96xf32> to vector<8x32xf32>
    %193 = vector.extract_strided_slice %183 {offsets = [0, 96], sizes = [8, 32], strides = [1, 1]} : vector<8x128xf32> to vector<8x32xf32>
    %194 = math.tanh %193 : vector<8x32xf32>
    %195 = arith.mulf %191, %171 : vector<8x32xf32>
    %196 = arith.mulf %190, %194 : vector<8x32xf32>
    %197 = arith.addf %195, %196 : vector<8x32xf32>
    %198 = math.tanh %197 : vector<8x32xf32>
    %199 = arith.mulf %192, %198 : vector<8x32xf32>
    %200 = arith.index_cast %c6_i32 : i32 to index
    %c0_77 = arith.constant 0 : index
    %c0_78 = arith.constant 0 : index
    %201 = vector.load %arg8[%200, %c0_77, %c0_78] : memref<16x8x32xf32, #tpu.memory_space<vmem>>, vector<1x8x32xf32>
    %202 = vector.shape_cast %201 : vector<1x8x32xf32> to vector<8x32xf32>
    %203 = vector.shape_cast %199 : vector<8x32xf32> to vector<1x8x32xf32>
    tpu.vector_store %arg8[%200, %c0_77, %c0_78], %203 {strides = array<i32>} : memref<16x8x32xf32, #tpu.memory_space<vmem>>, vector<1x8x32xf32>,
    %c7_i32 = arith.constant 7 : i32
    %204 = arith.index_cast %c7_i32 : i32 to index
    %c0_79 = arith.constant 0 : index
    %c0_80 = arith.constant 0 : index
    %205 = vector.load %arg10[%204, %c0_79, %c0_80] : memref<16x8x128xf32, #tpu.memory_space<vmem>>, vector<1x8x128xf32>
    %206 = vector.shape_cast %205 : vector<1x8x128xf32> to vector<8x128xf32>
    %c0_81 = arith.constant 0 : index
    %c0_82 = arith.constant 0 : index
    %207 = vector.load %arg6[%c0_81, %c0_82] : memref<32x128xf32, #tpu.memory_space<vmem>>, vector<32x128xf32>
    %cst_83 = arith.constant dense<0.000000e+00> : vector<8x128xf32>
    %208 = tpu.matmul %199, %207, %cst_83 {dimension_numbers = #tpu.dot_dimension_numbers<[1], [0], [0], [1], [0, 0, 1, 1], [], []>} : vector<8x32xf32>, vector<32x128xf32>, vector<8x128xf32> -> vector<8x128xf32>
    %209 = arith.addf %206, %208 : vector<8x128xf32>
    %210 = vector.extract_strided_slice %209 {offsets = [0, 0], sizes = [8, 96], strides = [1, 1]} : vector<8x128xf32> to vector<8x96xf32>
    %211 = arith.negf %210 : vector<8x96xf32>
    %212 = math.exp %211 : vector<8x96xf32>
    %cst_84 = arith.constant 1.000000e+00 : f32
    %213 = vector.broadcast %cst_84 : f32 to vector<8x96xf32>
    %214 = arith.addf %213, %212 : vector<8x96xf32>
    %215 = arith.divf %213, %214 : vector<8x96xf32>
    %216 = vector.extract_strided_slice %215 {offsets = [0, 0], sizes = [8, 32], strides = [1, 1]} : vector<8x96xf32> to vector<8x32xf32>
    %217 = vector.extract_strided_slice %215 {offsets = [0, 32], sizes = [8, 32], strides = [1, 1]} : vector<8x96xf32> to vector<8x32xf32>
    %218 = vector.extract_strided_slice %215 {offsets = [0, 64], sizes = [8, 32], strides = [1, 1]} : vector<8x96xf32> to vector<8x32xf32>
    %219 = vector.extract_strided_slice %209 {offsets = [0, 96], sizes = [8, 32], strides = [1, 1]} : vector<8x128xf32> to vector<8x32xf32>
    %220 = math.tanh %219 : vector<8x32xf32>
    %221 = arith.mulf %217, %197 : vector<8x32xf32>
    %222 = arith.mulf %216, %220 : vector<8x32xf32>
    %223 = arith.addf %221, %222 : vector<8x32xf32>
    %224 = math.tanh %223 : vector<8x32xf32>
    %225 = arith.mulf %218, %224 : vector<8x32xf32>
    %226 = arith.index_cast %c7_i32 : i32 to index
    %c0_85 = arith.constant 0 : index
    %c0_86 = arith.constant 0 : index
    %227 = vector.load %arg8[%226, %c0_85, %c0_86] : memref<16x8x32xf32, #tpu.memory_space<vmem>>, vector<1x8x32xf32>
    %228 = vector.shape_cast %227 : vector<1x8x32xf32> to vector<8x32xf32>
    %229 = vector.shape_cast %225 : vector<8x32xf32> to vector<1x8x32xf32>
    tpu.vector_store %arg8[%226, %c0_85, %c0_86], %229 {strides = array<i32>} : memref<16x8x32xf32, #tpu.memory_space<vmem>>, vector<1x8x32xf32>,
    %c8_i32 = arith.constant 8 : i32
    %230 = arith.index_cast %c8_i32 : i32 to index
    %c0_87 = arith.constant 0 : index
    %c0_88 = arith.constant 0 : index
    %231 = vector.load %arg10[%230, %c0_87, %c0_88] : memref<16x8x128xf32, #tpu.memory_space<vmem>>, vector<1x8x128xf32>
    %232 = vector.shape_cast %231 : vector<1x8x128xf32> to vector<8x128xf32>
    %c0_89 = arith.constant 0 : index
    %c0_90 = arith.constant 0 : index
    %233 = vector.load %arg6[%c0_89, %c0_90] : memref<32x128xf32, #tpu.memory_space<vmem>>, vector<32x128xf32>
    %cst_91 = arith.constant dense<0.000000e+00> : vector<8x128xf32>
    %234 = tpu.matmul %225, %233, %cst_91 {dimension_numbers = #tpu.dot_dimension_numbers<[1], [0], [0], [1], [0, 0, 1, 1], [], []>} : vector<8x32xf32>, vector<32x128xf32>, vector<8x128xf32> -> vector<8x128xf32>
    %235 = arith.addf %232, %234 : vector<8x128xf32>
    %236 = vector.extract_strided_slice %235 {offsets = [0, 0], sizes = [8, 96], strides = [1, 1]} : vector<8x128xf32> to vector<8x96xf32>
    %237 = arith.negf %236 : vector<8x96xf32>
    %238 = math.exp %237 : vector<8x96xf32>
    %cst_92 = arith.constant 1.000000e+00 : f32
    %239 = vector.broadcast %cst_92 : f32 to vector<8x96xf32>
    %240 = arith.addf %239, %238 : vector<8x96xf32>
    %241 = arith.divf %239, %240 : vector<8x96xf32>
    %242 = vector.extract_strided_slice %241 {offsets = [0, 0], sizes = [8, 32], strides = [1, 1]} : vector<8x96xf32> to vector<8x32xf32>
    %243 = vector.extract_strided_slice %241 {offsets = [0, 32], sizes = [8, 32], strides = [1, 1]} : vector<8x96xf32> to vector<8x32xf32>
    %244 = vector.extract_strided_slice %241 {offsets = [0, 64], sizes = [8, 32], strides = [1, 1]} : vector<8x96xf32> to vector<8x32xf32>
    %245 = vector.extract_strided_slice %235 {offsets = [0, 96], sizes = [8, 32], strides = [1, 1]} : vector<8x128xf32> to vector<8x32xf32>
    %246 = math.tanh %245 : vector<8x32xf32>
    %247 = arith.mulf %243, %223 : vector<8x32xf32>
    %248 = arith.mulf %242, %246 : vector<8x32xf32>
    %249 = arith.addf %247, %248 : vector<8x32xf32>
    %250 = math.tanh %249 : vector<8x32xf32>
    %251 = arith.mulf %244, %250 : vector<8x32xf32>
    %252 = arith.index_cast %c8_i32 : i32 to index
    %c0_93 = arith.constant 0 : index
    %c0_94 = arith.constant 0 : index
    %253 = vector.load %arg8[%252, %c0_93, %c0_94] : memref<16x8x32xf32, #tpu.memory_space<vmem>>, vector<1x8x32xf32>
    %254 = vector.shape_cast %253 : vector<1x8x32xf32> to vector<8x32xf32>
    %255 = vector.shape_cast %251 : vector<8x32xf32> to vector<1x8x32xf32>
    tpu.vector_store %arg8[%252, %c0_93, %c0_94], %255 {strides = array<i32>} : memref<16x8x32xf32, #tpu.memory_space<vmem>>, vector<1x8x32xf32>,
    %c9_i32 = arith.constant 9 : i32
    %256 = arith.index_cast %c9_i32 : i32 to index
    %c0_95 = arith.constant 0 : index
    %c0_96 = arith.constant 0 : index
    %257 = vector.load %arg10[%256, %c0_95, %c0_96] : memref<16x8x128xf32, #tpu.memory_space<vmem>>, vector<1x8x128xf32>
    %258 = vector.shape_cast %257 : vector<1x8x128xf32> to vector<8x128xf32>
    %c0_97 = arith.constant 0 : index
    %c0_98 = arith.constant 0 : index
    %259 = vector.load %arg6[%c0_97, %c0_98] : memref<32x128xf32, #tpu.memory_space<vmem>>, vector<32x128xf32>
    %cst_99 = arith.constant dense<0.000000e+00> : vector<8x128xf32>
    %260 = tpu.matmul %251, %259, %cst_99 {dimension_numbers = #tpu.dot_dimension_numbers<[1], [0], [0], [1], [0, 0, 1, 1], [], []>} : vector<8x32xf32>, vector<32x128xf32>, vector<8x128xf32> -> vector<8x128xf32>
    %261 = arith.addf %258, %260 : vector<8x128xf32>
    %262 = vector.extract_strided_slice %261 {offsets = [0, 0], sizes = [8, 96], strides = [1, 1]} : vector<8x128xf32> to vector<8x96xf32>
    %263 = arith.negf %262 : vector<8x96xf32>
    %264 = math.exp %263 : vector<8x96xf32>
    %cst_100 = arith.constant 1.000000e+00 : f32
    %265 = vector.broadcast %cst_100 : f32 to vector<8x96xf32>
    %266 = arith.addf %265, %264 : vector<8x96xf32>
    %267 = arith.divf %265, %266 : vector<8x96xf32>
    %268 = vector.extract_strided_slice %267 {offsets = [0, 0], sizes = [8, 32], strides = [1, 1]} : vector<8x96xf32> to vector<8x32xf32>
    %269 = vector.extract_strided_slice %267 {offsets = [0, 32], sizes = [8, 32], strides = [1, 1]} : vector<8x96xf32> to vector<8x32xf32>
    %270 = vector.extract_strided_slice %267 {offsets = [0, 64], sizes = [8, 32], strides = [1, 1]} : vector<8x96xf32> to vector<8x32xf32>
    %271 = vector.extract_strided_slice %261 {offsets = [0, 96], sizes = [8, 32], strides = [1, 1]} : vector<8x128xf32> to vector<8x32xf32>
    %272 = math.tanh %271 : vector<8x32xf32>
    %273 = arith.mulf %269, %249 : vector<8x32xf32>
    %274 = arith.mulf %268, %272 : vector<8x32xf32>
    %275 = arith.addf %273, %274 : vector<8x32xf32>
    %276 = math.tanh %275 : vector<8x32xf32>
    %277 = arith.mulf %270, %276 : vector<8x32xf32>
    %278 = arith.index_cast %c9_i32 : i32 to index
    %c0_101 = arith.constant 0 : index
    %c0_102 = arith.constant 0 : index
    %279 = vector.load %arg8[%278, %c0_101, %c0_102] : memref<16x8x32xf32, #tpu.memory_space<vmem>>, vector<1x8x32xf32>
    %280 = vector.shape_cast %279 : vector<1x8x32xf32> to vector<8x32xf32>
    %281 = vector.shape_cast %277 : vector<8x32xf32> to vector<1x8x32xf32>
    tpu.vector_store %arg8[%278, %c0_101, %c0_102], %281 {strides = array<i32>} : memref<16x8x32xf32, #tpu.memory_space<vmem>>, vector<1x8x32xf32>,
    %c10_i32 = arith.constant 10 : i32
    %282 = arith.index_cast %c10_i32 : i32 to index
    %c0_103 = arith.constant 0 : index
    %c0_104 = arith.constant 0 : index
    %283 = vector.load %arg10[%282, %c0_103, %c0_104] : memref<16x8x128xf32, #tpu.memory_space<vmem>>, vector<1x8x128xf32>
    %284 = vector.shape_cast %283 : vector<1x8x128xf32> to vector<8x128xf32>
    %c0_105 = arith.constant 0 : index
    %c0_106 = arith.constant 0 : index
    %285 = vector.load %arg6[%c0_105, %c0_106] : memref<32x128xf32, #tpu.memory_space<vmem>>, vector<32x128xf32>
    %cst_107 = arith.constant dense<0.000000e+00> : vector<8x128xf32>
    %286 = tpu.matmul %277, %285, %cst_107 {dimension_numbers = #tpu.dot_dimension_numbers<[1], [0], [0], [1], [0, 0, 1, 1], [], []>} : vector<8x32xf32>, vector<32x128xf32>, vector<8x128xf32> -> vector<8x128xf32>
    %287 = arith.addf %284, %286 : vector<8x128xf32>
    %288 = vector.extract_strided_slice %287 {offsets = [0, 0], sizes = [8, 96], strides = [1, 1]} : vector<8x128xf32> to vector<8x96xf32>
    %289 = arith.negf %288 : vector<8x96xf32>
    %290 = math.exp %289 : vector<8x96xf32>
    %cst_108 = arith.constant 1.000000e+00 : f32
    %291 = vector.broadcast %cst_108 : f32 to vector<8x96xf32>
    %292 = arith.addf %291, %290 : vector<8x96xf32>
    %293 = arith.divf %291, %292 : vector<8x96xf32>
    %294 = vector.extract_strided_slice %293 {offsets = [0, 0], sizes = [8, 32], strides = [1, 1]} : vector<8x96xf32> to vector<8x32xf32>
    %295 = vector.extract_strided_slice %293 {offsets = [0, 32], sizes = [8, 32], strides = [1, 1]} : vector<8x96xf32> to vector<8x32xf32>
    %296 = vector.extract_strided_slice %293 {offsets = [0, 64], sizes = [8, 32], strides = [1, 1]} : vector<8x96xf32> to vector<8x32xf32>
    %297 = vector.extract_strided_slice %287 {offsets = [0, 96], sizes = [8, 32], strides = [1, 1]} : vector<8x128xf32> to vector<8x32xf32>
    %298 = math.tanh %297 : vector<8x32xf32>
    %299 = arith.mulf %295, %275 : vector<8x32xf32>
    %300 = arith.mulf %294, %298 : vector<8x32xf32>
    %301 = arith.addf %299, %300 : vector<8x32xf32>
    %302 = math.tanh %301 : vector<8x32xf32>
    %303 = arith.mulf %296, %302 : vector<8x32xf32>
    %304 = arith.index_cast %c10_i32 : i32 to index
    %c0_109 = arith.constant 0 : index
    %c0_110 = arith.constant 0 : index
    %305 = vector.load %arg8[%304, %c0_109, %c0_110] : memref<16x8x32xf32, #tpu.memory_space<vmem>>, vector<1x8x32xf32>
    %306 = vector.shape_cast %305 : vector<1x8x32xf32> to vector<8x32xf32>
    %307 = vector.shape_cast %303 : vector<8x32xf32> to vector<1x8x32xf32>
    tpu.vector_store %arg8[%304, %c0_109, %c0_110], %307 {strides = array<i32>} : memref<16x8x32xf32, #tpu.memory_space<vmem>>, vector<1x8x32xf32>,
    %c11_i32 = arith.constant 11 : i32
    %308 = arith.index_cast %c11_i32 : i32 to index
    %c0_111 = arith.constant 0 : index
    %c0_112 = arith.constant 0 : index
    %309 = vector.load %arg10[%308, %c0_111, %c0_112] : memref<16x8x128xf32, #tpu.memory_space<vmem>>, vector<1x8x128xf32>
    %310 = vector.shape_cast %309 : vector<1x8x128xf32> to vector<8x128xf32>
    %c0_113 = arith.constant 0 : index
    %c0_114 = arith.constant 0 : index
    %311 = vector.load %arg6[%c0_113, %c0_114] : memref<32x128xf32, #tpu.memory_space<vmem>>, vector<32x128xf32>
    %cst_115 = arith.constant dense<0.000000e+00> : vector<8x128xf32>
    %312 = tpu.matmul %303, %311, %cst_115 {dimension_numbers = #tpu.dot_dimension_numbers<[1], [0], [0], [1], [0, 0, 1, 1], [], []>} : vector<8x32xf32>, vector<32x128xf32>, vector<8x128xf32> -> vector<8x128xf32>
    %313 = arith.addf %310, %312 : vector<8x128xf32>
    %314 = vector.extract_strided_slice %313 {offsets = [0, 0], sizes = [8, 96], strides = [1, 1]} : vector<8x128xf32> to vector<8x96xf32>
    %315 = arith.negf %314 : vector<8x96xf32>
    %316 = math.exp %315 : vector<8x96xf32>
    %cst_116 = arith.constant 1.000000e+00 : f32
    %317 = vector.broadcast %cst_116 : f32 to vector<8x96xf32>
    %318 = arith.addf %317, %316 : vector<8x96xf32>
    %319 = arith.divf %317, %318 : vector<8x96xf32>
    %320 = vector.extract_strided_slice %319 {offsets = [0, 0], sizes = [8, 32], strides = [1, 1]} : vector<8x96xf32> to vector<8x32xf32>
    %321 = vector.extract_strided_slice %319 {offsets = [0, 32], sizes = [8, 32], strides = [1, 1]} : vector<8x96xf32> to vector<8x32xf32>
    %322 = vector.extract_strided_slice %319 {offsets = [0, 64], sizes = [8, 32], strides = [1, 1]} : vector<8x96xf32> to vector<8x32xf32>
    %323 = vector.extract_strided_slice %313 {offsets = [0, 96], sizes = [8, 32], strides = [1, 1]} : vector<8x128xf32> to vector<8x32xf32>
    %324 = math.tanh %323 : vector<8x32xf32>
    %325 = arith.mulf %321, %301 : vector<8x32xf32>
    %326 = arith.mulf %320, %324 : vector<8x32xf32>
    %327 = arith.addf %325, %326 : vector<8x32xf32>
    %328 = math.tanh %327 : vector<8x32xf32>
    %329 = arith.mulf %322, %328 : vector<8x32xf32>
    %330 = arith.index_cast %c11_i32 : i32 to index
    %c0_117 = arith.constant 0 : index
    %c0_118 = arith.constant 0 : index
    %331 = vector.load %arg8[%330, %c0_117, %c0_118] : memref<16x8x32xf32, #tpu.memory_space<vmem>>, vector<1x8x32xf32>
    %332 = vector.shape_cast %331 : vector<1x8x32xf32> to vector<8x32xf32>
    %333 = vector.shape_cast %329 : vector<8x32xf32> to vector<1x8x32xf32>
    tpu.vector_store %arg8[%330, %c0_117, %c0_118], %333 {strides = array<i32>} : memref<16x8x32xf32, #tpu.memory_space<vmem>>, vector<1x8x32xf32>,
    %c12_i32 = arith.constant 12 : i32
    %334 = arith.index_cast %c12_i32 : i32 to index
    %c0_119 = arith.constant 0 : index
    %c0_120 = arith.constant 0 : index
    %335 = vector.load %arg10[%334, %c0_119, %c0_120] : memref<16x8x128xf32, #tpu.memory_space<vmem>>, vector<1x8x128xf32>
    %336 = vector.shape_cast %335 : vector<1x8x128xf32> to vector<8x128xf32>
    %c0_121 = arith.constant 0 : index
    %c0_122 = arith.constant 0 : index
    %337 = vector.load %arg6[%c0_121, %c0_122] : memref<32x128xf32, #tpu.memory_space<vmem>>, vector<32x128xf32>
    %cst_123 = arith.constant dense<0.000000e+00> : vector<8x128xf32>
    %338 = tpu.matmul %329, %337, %cst_123 {dimension_numbers = #tpu.dot_dimension_numbers<[1], [0], [0], [1], [0, 0, 1, 1], [], []>} : vector<8x32xf32>, vector<32x128xf32>, vector<8x128xf32> -> vector<8x128xf32>
    %339 = arith.addf %336, %338 : vector<8x128xf32>
    %340 = vector.extract_strided_slice %339 {offsets = [0, 0], sizes = [8, 96], strides = [1, 1]} : vector<8x128xf32> to vector<8x96xf32>
    %341 = arith.negf %340 : vector<8x96xf32>
    %342 = math.exp %341 : vector<8x96xf32>
    %cst_124 = arith.constant 1.000000e+00 : f32
    %343 = vector.broadcast %cst_124 : f32 to vector<8x96xf32>
    %344 = arith.addf %343, %342 : vector<8x96xf32>
    %345 = arith.divf %343, %344 : vector<8x96xf32>
    %346 = vector.extract_strided_slice %345 {offsets = [0, 0], sizes = [8, 32], strides = [1, 1]} : vector<8x96xf32> to vector<8x32xf32>
    %347 = vector.extract_strided_slice %345 {offsets = [0, 32], sizes = [8, 32], strides = [1, 1]} : vector<8x96xf32> to vector<8x32xf32>
    %348 = vector.extract_strided_slice %345 {offsets = [0, 64], sizes = [8, 32], strides = [1, 1]} : vector<8x96xf32> to vector<8x32xf32>
    %349 = vector.extract_strided_slice %339 {offsets = [0, 96], sizes = [8, 32], strides = [1, 1]} : vector<8x128xf32> to vector<8x32xf32>
    %350 = math.tanh %349 : vector<8x32xf32>
    %351 = arith.mulf %347, %327 : vector<8x32xf32>
    %352 = arith.mulf %346, %350 : vector<8x32xf32>
    %353 = arith.addf %351, %352 : vector<8x32xf32>
    %354 = math.tanh %353 : vector<8x32xf32>
    %355 = arith.mulf %348, %354 : vector<8x32xf32>
    %356 = arith.index_cast %c12_i32 : i32 to index
    %c0_125 = arith.constant 0 : index
    %c0_126 = arith.constant 0 : index
    %357 = vector.load %arg8[%356, %c0_125, %c0_126] : memref<16x8x32xf32, #tpu.memory_space<vmem>>, vector<1x8x32xf32>
    %358 = vector.shape_cast %357 : vector<1x8x32xf32> to vector<8x32xf32>
    %359 = vector.shape_cast %355 : vector<8x32xf32> to vector<1x8x32xf32>
    tpu.vector_store %arg8[%356, %c0_125, %c0_126], %359 {strides = array<i32>} : memref<16x8x32xf32, #tpu.memory_space<vmem>>, vector<1x8x32xf32>,
    %c13_i32 = arith.constant 13 : i32
    %360 = arith.index_cast %c13_i32 : i32 to index
    %c0_127 = arith.constant 0 : index
    %c0_128 = arith.constant 0 : index
    %361 = vector.load %arg10[%360, %c0_127, %c0_128] : memref<16x8x128xf32, #tpu.memory_space<vmem>>, vector<1x8x128xf32>
    %362 = vector.shape_cast %361 : vector<1x8x128xf32> to vector<8x128xf32>
    %c0_129 = arith.constant 0 : index
    %c0_130 = arith.constant 0 : index
    %363 = vector.load %arg6[%c0_129, %c0_130] : memref<32x128xf32, #tpu.memory_space<vmem>>, vector<32x128xf32>
    %cst_131 = arith.constant dense<0.000000e+00> : vector<8x128xf32>
    %364 = tpu.matmul %355, %363, %cst_131 {dimension_numbers = #tpu.dot_dimension_numbers<[1], [0], [0], [1], [0, 0, 1, 1], [], []>} : vector<8x32xf32>, vector<32x128xf32>, vector<8x128xf32> -> vector<8x128xf32>
    %365 = arith.addf %362, %364 : vector<8x128xf32>
    %366 = vector.extract_strided_slice %365 {offsets = [0, 0], sizes = [8, 96], strides = [1, 1]} : vector<8x128xf32> to vector<8x96xf32>
    %367 = arith.negf %366 : vector<8x96xf32>
    %368 = math.exp %367 : vector<8x96xf32>
    %cst_132 = arith.constant 1.000000e+00 : f32
    %369 = vector.broadcast %cst_132 : f32 to vector<8x96xf32>
    %370 = arith.addf %369, %368 : vector<8x96xf32>
    %371 = arith.divf %369, %370 : vector<8x96xf32>
    %372 = vector.extract_strided_slice %371 {offsets = [0, 0], sizes = [8, 32], strides = [1, 1]} : vector<8x96xf32> to vector<8x32xf32>
    %373 = vector.extract_strided_slice %371 {offsets = [0, 32], sizes = [8, 32], strides = [1, 1]} : vector<8x96xf32> to vector<8x32xf32>
    %374 = vector.extract_strided_slice %371 {offsets = [0, 64], sizes = [8, 32], strides = [1, 1]} : vector<8x96xf32> to vector<8x32xf32>
    %375 = vector.extract_strided_slice %365 {offsets = [0, 96], sizes = [8, 32], strides = [1, 1]} : vector<8x128xf32> to vector<8x32xf32>
    %376 = math.tanh %375 : vector<8x32xf32>
    %377 = arith.mulf %373, %353 : vector<8x32xf32>
    %378 = arith.mulf %372, %376 : vector<8x32xf32>
    %379 = arith.addf %377, %378 : vector<8x32xf32>
    %380 = math.tanh %379 : vector<8x32xf32>
    %381 = arith.mulf %374, %380 : vector<8x32xf32>
    %382 = arith.index_cast %c13_i32 : i32 to index
    %c0_133 = arith.constant 0 : index
    %c0_134 = arith.constant 0 : index
    %383 = vector.load %arg8[%382, %c0_133, %c0_134] : memref<16x8x32xf32, #tpu.memory_space<vmem>>, vector<1x8x32xf32>
    %384 = vector.shape_cast %383 : vector<1x8x32xf32> to vector<8x32xf32>
    %385 = vector.shape_cast %381 : vector<8x32xf32> to vector<1x8x32xf32>
    tpu.vector_store %arg8[%382, %c0_133, %c0_134], %385 {strides = array<i32>} : memref<16x8x32xf32, #tpu.memory_space<vmem>>, vector<1x8x32xf32>,
    %c14_i32 = arith.constant 14 : i32
    %386 = arith.index_cast %c14_i32 : i32 to index
    %c0_135 = arith.constant 0 : index
    %c0_136 = arith.constant 0 : index
    %387 = vector.load %arg10[%386, %c0_135, %c0_136] : memref<16x8x128xf32, #tpu.memory_space<vmem>>, vector<1x8x128xf32>
    %388 = vector.shape_cast %387 : vector<1x8x128xf32> to vector<8x128xf32>
    %c0_137 = arith.constant 0 : index
    %c0_138 = arith.constant 0 : index
    %389 = vector.load %arg6[%c0_137, %c0_138] : memref<32x128xf32, #tpu.memory_space<vmem>>, vector<32x128xf32>
    %cst_139 = arith.constant dense<0.000000e+00> : vector<8x128xf32>
    %390 = tpu.matmul %381, %389, %cst_139 {dimension_numbers = #tpu.dot_dimension_numbers<[1], [0], [0], [1], [0, 0, 1, 1], [], []>} : vector<8x32xf32>, vector<32x128xf32>, vector<8x128xf32> -> vector<8x128xf32>
    %391 = arith.addf %388, %390 : vector<8x128xf32>
    %392 = vector.extract_strided_slice %391 {offsets = [0, 0], sizes = [8, 96], strides = [1, 1]} : vector<8x128xf32> to vector<8x96xf32>
    %393 = arith.negf %392 : vector<8x96xf32>
    %394 = math.exp %393 : vector<8x96xf32>
    %cst_140 = arith.constant 1.000000e+00 : f32
    %395 = vector.broadcast %cst_140 : f32 to vector<8x96xf32>
    %396 = arith.addf %395, %394 : vector<8x96xf32>
    %397 = arith.divf %395, %396 : vector<8x96xf32>
    %398 = vector.extract_strided_slice %397 {offsets = [0, 0], sizes = [8, 32], strides = [1, 1]} : vector<8x96xf32> to vector<8x32xf32>
    %399 = vector.extract_strided_slice %397 {offsets = [0, 32], sizes = [8, 32], strides = [1, 1]} : vector<8x96xf32> to vector<8x32xf32>
    %400 = vector.extract_strided_slice %397 {offsets = [0, 64], sizes = [8, 32], strides = [1, 1]} : vector<8x96xf32> to vector<8x32xf32>
    %401 = vector.extract_strided_slice %391 {offsets = [0, 96], sizes = [8, 32], strides = [1, 1]} : vector<8x128xf32> to vector<8x32xf32>
    %402 = math.tanh %401 : vector<8x32xf32>
    %403 = arith.mulf %399, %379 : vector<8x32xf32>
    %404 = arith.mulf %398, %402 : vector<8x32xf32>
    %405 = arith.addf %403, %404 : vector<8x32xf32>
    %406 = math.tanh %405 : vector<8x32xf32>
    %407 = arith.mulf %400, %406 : vector<8x32xf32>
    %408 = arith.index_cast %c14_i32 : i32 to index
    %c0_141 = arith.constant 0 : index
    %c0_142 = arith.constant 0 : index
    %409 = vector.load %arg8[%408, %c0_141, %c0_142] : memref<16x8x32xf32, #tpu.memory_space<vmem>>, vector<1x8x32xf32>
    %410 = vector.shape_cast %409 : vector<1x8x32xf32> to vector<8x32xf32>
    %411 = vector.shape_cast %407 : vector<8x32xf32> to vector<1x8x32xf32>
    tpu.vector_store %arg8[%408, %c0_141, %c0_142], %411 {strides = array<i32>} : memref<16x8x32xf32, #tpu.memory_space<vmem>>, vector<1x8x32xf32>,
    %c15_i32 = arith.constant 15 : i32
    %412 = arith.index_cast %c15_i32 : i32 to index
    %c0_143 = arith.constant 0 : index
    %c0_144 = arith.constant 0 : index
    %413 = vector.load %arg10[%412, %c0_143, %c0_144] : memref<16x8x128xf32, #tpu.memory_space<vmem>>, vector<1x8x128xf32>
    %414 = vector.shape_cast %413 : vector<1x8x128xf32> to vector<8x128xf32>
    %c0_145 = arith.constant 0 : index
    %c0_146 = arith.constant 0 : index
    %415 = vector.load %arg6[%c0_145, %c0_146] : memref<32x128xf32, #tpu.memory_space<vmem>>, vector<32x128xf32>
    %cst_147 = arith.constant dense<0.000000e+00> : vector<8x128xf32>
    %416 = tpu.matmul %407, %415, %cst_147 {dimension_numbers = #tpu.dot_dimension_numbers<[1], [0], [0], [1], [0, 0, 1, 1], [], []>} : vector<8x32xf32>, vector<32x128xf32>, vector<8x128xf32> -> vector<8x128xf32>
    %417 = arith.addf %414, %416 : vector<8x128xf32>
    %418 = vector.extract_strided_slice %417 {offsets = [0, 0], sizes = [8, 96], strides = [1, 1]} : vector<8x128xf32> to vector<8x96xf32>
    %419 = arith.negf %418 : vector<8x96xf32>
    %420 = math.exp %419 : vector<8x96xf32>
    %cst_148 = arith.constant 1.000000e+00 : f32
    %421 = vector.broadcast %cst_148 : f32 to vector<8x96xf32>
    %422 = arith.addf %421, %420 : vector<8x96xf32>
    %423 = arith.divf %421, %422 : vector<8x96xf32>
    %424 = vector.extract_strided_slice %423 {offsets = [0, 0], sizes = [8, 32], strides = [1, 1]} : vector<8x96xf32> to vector<8x32xf32>
    %425 = vector.extract_strided_slice %423 {offsets = [0, 32], sizes = [8, 32], strides = [1, 1]} : vector<8x96xf32> to vector<8x32xf32>
    %426 = vector.extract_strided_slice %423 {offsets = [0, 64], sizes = [8, 32], strides = [1, 1]} : vector<8x96xf32> to vector<8x32xf32>
    %427 = vector.extract_strided_slice %417 {offsets = [0, 96], sizes = [8, 32], strides = [1, 1]} : vector<8x128xf32> to vector<8x32xf32>
    %428 = math.tanh %427 : vector<8x32xf32>
    %429 = arith.mulf %425, %405 : vector<8x32xf32>
    %430 = arith.mulf %424, %428 : vector<8x32xf32>
    %431 = arith.addf %429, %430 : vector<8x32xf32>
    %432 = math.tanh %431 : vector<8x32xf32>
    %433 = arith.mulf %426, %432 : vector<8x32xf32>
    %434 = arith.index_cast %c15_i32 : i32 to index
    %c0_149 = arith.constant 0 : index
    %c0_150 = arith.constant 0 : index
    %435 = vector.load %arg8[%434, %c0_149, %c0_150] : memref<16x8x32xf32, #tpu.memory_space<vmem>>, vector<1x8x32xf32>
    %436 = vector.shape_cast %435 : vector<1x8x32xf32> to vector<8x32xf32>
    %437 = vector.shape_cast %433 : vector<8x32xf32> to vector<1x8x32xf32>
    tpu.vector_store %arg8[%434, %c0_149, %c0_150], %437 {strides = array<i32>} : memref<16x8x32xf32, #tpu.memory_space<vmem>>, vector<1x8x32xf32>,
    %c16_i32 = arith.constant 16 : i32
    %c0_151 = arith.constant 0 : index
    %c0_152 = arith.constant 0 : index
    %438 = vector.load %arg11[%c0_151, %c0_152] : memref<8x32xf32, #tpu.memory_space<vmem>>, vector<8x32xf32>
    tpu.vector_store %arg11[%c0_151, %c0_152], %433 {strides = array<i32>} : memref<8x32xf32, #tpu.memory_space<vmem>>, vector<8x32xf32>,
    %c0_153 = arith.constant 0 : index
    %c0_154 = arith.constant 0 : index
    %439 = vector.load %arg12[%c0_153, %c0_154] : memref<8x32xf32, #tpu.memory_space<vmem>>, vector<8x32xf32>
    tpu.vector_store %arg12[%c0_153, %c0_154], %431 {strides = array<i32>} : memref<8x32xf32, #tpu.memory_space<vmem>>, vector<8x32xf32>,
    %c0_155 = arith.constant 0 : index
    %c0_156 = arith.constant 0 : index
    %440 = vector.load %arg9[%c0_155, %c0_156] : memref<8x32xf32, #tpu.memory_space<vmem>>, vector<8x32xf32>
    tpu.vector_store %arg9[%c0_155, %c0_156], %431 {strides = array<i32>} : memref<8x32xf32, #tpu.memory_space<vmem>>, vector<8x32xf32>,
    return
  }
  func.func @transform_0(%arg0: i32, %arg1: i32) -> (i32, i32, i32) {
    %c0_i32 = arith.constant 0 : i32
    %c0_i32_0 = arith.constant 0 : i32
    return %arg1, %arg0, %c0_i32 : i32, i32, i32
  }
  func.func @transform_1(%arg0: i32, %arg1: i32) -> (i32, i32) {
    %c0_i32 = arith.constant 0 : i32
    %c0_i32_0 = arith.constant 0 : i32
    return %arg0, %c0_i32 : i32, i32
  }
  func.func @transform_2(%arg0: i32, %arg1: i32) -> (i32, i32) {
    %c0_i32 = arith.constant 0 : i32
    %c0_i32_0 = arith.constant 0 : i32
    return %arg0, %c0_i32 : i32, i32
  }
  func.func @transform_3(%arg0: i32, %arg1: i32) -> (i32, i32) {
    %c0_i32 = arith.constant 0 : i32
    %c0_i32_0 = arith.constant 0 : i32
    %c0_i32_1 = arith.constant 0 : i32
    return %c0_i32, %c0_i32_0 : i32, i32
  }
  func.func @transform_4(%arg0: i32, %arg1: i32) -> (i32, i32) {
    %c0_i32 = arith.constant 0 : i32
    %c0_i32_0 = arith.constant 0 : i32
    %c0_i32_1 = arith.constant 0 : i32
    return %c0_i32, %c0_i32_0 : i32, i32
  }
  func.func @transform_5(%arg0: i32, %arg1: i32) -> (i32, i32) {
    %c0_i32 = arith.constant 0 : i32
    %c0_i32_0 = arith.constant 0 : i32
    %c0_i32_1 = arith.constant 0 : i32
    return %c0_i32, %c0_i32_0 : i32, i32
  }
  func.func @transform_6(%arg0: i32, %arg1: i32) -> (i32, i32, i32) {
    %c0_i32 = arith.constant 0 : i32
    %c0_i32_0 = arith.constant 0 : i32
    return %arg1, %arg0, %c0_i32 : i32, i32, i32
  }
  func.func @transform_7(%arg0: i32, %arg1: i32) -> (i32, i32) {
    %c0_i32 = arith.constant 0 : i32
    %c0_i32_0 = arith.constant 0 : i32
    return %arg0, %c0_i32 : i32, i32
  }
}

</mosaic_0001>

<llo_original>
// kernel: tpu_custom_call.1
$region0: #{tpu_custom_call.1}
  #allocation0 [shape = 'u32[]', space=smem, size = 0x4, offset = 0x4, fixed_abs, tag = 'smem constant byte address 0x4 - core index']
  #allocation1 [shape = 'u32[72,128]{1,0:T(1,128)}', space=vmem, size = 0x9000, scoped, tag = 'internal scratch']
  #allocation2 [shape = 'f32[16,8,128]{2,1,0:T(8,128)}', space=vmem, size = 0x10000, scoped, tag = 'scratch operand']
  #allocation3 [shape = 'f32[8,32]{1,0:T(8,128)}', space=vmem, size = 0x1000, scoped, tag = 'scratch operand']
  #allocation4 [shape = 'f32[8,32]{1,0:T(8,128)}', space=vmem, size = 0x1000, scoped, tag = 'scratch operand']
  %s0 = inlined_call_operand.vmem [shape: f32[32,8,16], index: 0, kind: input, shape index: {}]
  %s1 = inlined_call_operand.vmem [shape: f32[8,32], index: 1, kind: input, shape index: {}]
  %s2 = inlined_call_operand.vmem [shape: f32[8,32], index: 2, kind: input, shape index: {}]
  %s3 = inlined_call_operand.vmem [shape: f32[16,128], index: 3, kind: input, shape index: {}]
  %s4 = inlined_call_operand.vmem [shape: f32[32,128], index: 4, kind: input, shape index: {}]
  %s5 = inlined_call_operand.vmem [shape: f32[1,128], index: 5, kind: input, shape index: {}]
  %s6 = inlined_call_operand.hbm [shape: f32[32,8,32], index: 6, kind: output, shape index: {0}]
  %s7 = inlined_call_operand.hbm [shape: f32[8,32], index: 7, kind: output, shape index: {1}]
  %8 = xla_tuple %s6, %s7
  %s9 = sld [smem:[#allocation0]]
  $region69: #{tpu_custom_call.1} parent=0
    _
  %s11 = ssub.s32 1, %s9
  %s12 = scalar_select 0, %s11, %s9
  $region1: #{tpu_custom_call.1} parent=0
    #allocation5 [shape = 'u8[131072]{0}', space=vmem, size = 0x20000, scoped, tag = 'output window, operand 0']
    #allocation6 [shape = 's32[2]{0}', space=sflag, size = 0x8, scoped, tag = 'scoped memory for tpu_custom_call.1']
    #allocation7 [shape = 'u8[4096]{0}', space=vmem, size = 0x1000, scoped, tag = 'output window, operand 1, single buffered']
    #allocation8 [shape = 's32[1]{0}', space=sflag, size = 0x4, scoped, tag = 'scoped memory for tpu_custom_call.1']
    %13 = vsyncpa [#allocation6], 0
    %s14 = scalar_lea.sflag [#allocation6], 1
    %15 = vsyncpa %s14, 0
    %16 = vsyncpa [#allocation8], 0
    loop: start=0, step=1, limit=4
    $region2: #{tpu_custom_call.1} parent=1 // loop_pre_header
      _
    $region3: #{tpu_custom_call.1} parent=1 // loop_header
      %s18 = sphi 0, %s22
      %p19 = scmp.ge.s32.totalorder %s18, 4
      %s25 = sphi 0, %s37
      %s26 = sphi 0, %s33
      %s27 = sphi 0, %s25
      %s28 = sphi 0, %s26
      %s29 = sphi 0, %s27
      %s30 = sphi 0, %s28
      %s42 = sphi 0, %s44
      %s45 = sphi 0, %s42
      %s46 = sphi 0, %s45
      %s62 = sphi 0, %s46
      %s68 = sphi 0, %s70
      %s71 = sphi 0, %s68
      %s72 = sphi 0, %s71
      %s88 = sphi 0, %s72
      %s94 = sphi 0, %s96
      %s97 = sphi 0, %s94
      %s98 = sphi 0, %s97
      %s114 = sphi 0, %s98
      %s118 = sphi 0, %s118
      %s120 = sphi 0, %s118
      %s121 = sphi 0, %s120
      %s135 = sphi 0, %s121
      %s139 = sphi 0, %s139
      %s141 = sphi 0, %s139
      %s142 = sphi 0, %s141
      %s156 = sphi 0, %s142
      %s160 = sphi 0, %s160
      %s162 = sphi 0, %s160
      %s163 = sphi 0, %s162
      %s177 = sphi 0, %s163
      %s185 = sphi 0, %s187
      %s188 = sphi 0, %s185
      %s189 = sphi 0, %s188
      %s205 = sphi 0, %s189
      %s211 = sphi 0, %s213
      %s214 = sphi 0, %s211
      %s215 = sphi 0, %s214
      %s231 = sphi 0, %s215
    $region4: #{tpu_custom_call.1} parent=1 // loop_header_branch
      %21 = sbr.rel (%p19) target = $region8
    $region5: #{tpu_custom_call.1} parent=1 // loop_body
      %s23 = ssub.s32 %s18, 1
      %s24 = ssub.s32 %s18, 2
      %s31 = sadd.s32 1, %s26
      %p32 = scmp.ge.s32.totalorder %s31, 2
      %s33 = scalar_select %p32, 0, %s31
      %s34 = sadd.s32 1, %s25
      %s35 = scalar_select %p32, %s34, %s25
      %p36 = scmp.ge.s32.totalorder %s35, 1
      %s37 = scalar_select %p36, 0, %s35
      %s38 = ssub.s32 %s26, %s33
      %s39 = ssub.s32 %s25, %s37
      %s40 = sor.u32 %s38, %s39
      %p41 = scmp.eq.s32.totalorder %s40, 0
      %s43 = sadd.s32 %s42, 1
      %s44 = scalar_select %p41, %s42, %s43
      %p47 = pneg %p41
      %p48 = scmp.eq.s32.totalorder %s18, 1
      %p49 = por %p47, %p48
      %p50 = scmp.ne.s32.totalorder %s42, %s45
      %p51 = scmp.eq.s32.totalorder %s18, 0
      %p52 = por %p50, %p51
      %p53 = scmp.ne.s32.totalorder %s42, %s45
      %p54 = scmp.eq.s32.totalorder %s23, 1
      %p55 = por %p53, %p54
      %p56 = scmp.ne.s32.totalorder %s45, %s46
      %p57 = scmp.eq.s32.totalorder %s23, 0
      %p58 = por %p56, %p57
      %p59 = scmp.ne.s32.totalorder %s45, %s46
      %p60 = scmp.eq.s32.totalorder %s24, 1
      %p61 = por %p59, %p60
      %p63 = scmp.ne.s32.totalorder %s46, %s62
      %p64 = scmp.eq.s32.totalorder %s24, 0
      %p65 = por %p63, %p64
      %s66 = ssub.s32 %s25, %s37
      %p67 = scmp.eq.s32.totalorder %s66, 0
      %s69 = sadd.s32 %s68, 1
      %s70 = scalar_select %p67, %s68, %s69
      %p73 = pneg %p67
      %p74 = scmp.eq.s32.totalorder %s18, 1
      %p75 = por %p73, %p74
      %p76 = scmp.ne.s32.totalorder %s68, %s71
      %p77 = scmp.eq.s32.totalorder %s18, 0
      %p78 = por %p76, %p77
      %p79 = scmp.ne.s32.totalorder %s68, %s71
      %p80 = scmp.eq.s32.totalorder %s23, 1
      %p81 = por %p79, %p80
      %p82 = scmp.ne.s32.totalorder %s71, %s72
      %p83 = scmp.eq.s32.totalorder %s23, 0
      %p84 = por %p82, %p83
      %p85 = scmp.ne.s32.totalorder %s71, %s72
      %p86 = scmp.eq.s32.totalorder %s24, 1
      %p87 = por %p85, %p86
      %p89 = scmp.ne.s32.totalorder %s72, %s88
      %p90 = scmp.eq.s32.totalorder %s24, 0
      %p91 = por %p89, %p90
      %s92 = ssub.s32 %s25, %s37
      %p93 = scmp.eq.s32.totalorder %s92, 0
      %s95 = sadd.s32 %s94, 1
      %s96 = scalar_select %p93, %s94, %s95
      %p99 = pneg %p93
      %p100 = scmp.eq.s32.totalorder %s18, 1
      %p101 = por %p99, %p100
      %p102 = scmp.ne.s32.totalorder %s94, %s97
      %p103 = scmp.eq.s32.totalorder %s18, 0
      %p104 = por %p102, %p103
      %p105 = scmp.ne.s32.totalorder %s94, %s97
      %p106 = scmp.eq.s32.totalorder %s23, 1
      %p107 = por %p105, %p106
      %p108 = scmp.ne.s32.totalorder %s97, %s98
      %p109 = scmp.eq.s32.totalorder %s23, 0
      %p110 = por %p108, %p109
      %p111 = scmp.ne.s32.totalorder %s97, %s98
      %p112 = scmp.eq.s32.totalorder %s24, 1
      %p113 = por %p111, %p112
      %p115 = scmp.ne.s32.totalorder %s98, %s114
      %p116 = scmp.eq.s32.totalorder %s24, 0
      %p117 = por %p115, %p116
      %s119 = sadd.s32 %s118, 1
      %p122 = scmp.eq.s32.totalorder %s18, 1
      %p123 = scmp.ne.s32.totalorder %s118, %s120
      %p124 = scmp.eq.s32.totalorder %s18, 0
      %p125 = por %p123, %p124
      %p126 = scmp.ne.s32.totalorder %s118, %s120
      %p127 = scmp.eq.s32.totalorder %s23, 1
      %p128 = por %p126, %p127
      %p129 = scmp.ne.s32.totalorder %s120, %s121
      %p130 = scmp.eq.s32.totalorder %s23, 0
      %p131 = por %p129, %p130
      %p132 = scmp.ne.s32.totalorder %s120, %s121
      %p133 = scmp.eq.s32.totalorder %s24, 1
      %p134 = por %p132, %p133
      %p136 = scmp.ne.s32.totalorder %s121, %s135
      %p137 = scmp.eq.s32.totalorder %s24, 0
      %p138 = por %p136, %p137
      %s140 = sadd.s32 %s139, 1
      %p143 = scmp.eq.s32.totalorder %s18, 1
      %p144 = scmp.ne.s32.totalorder %s139, %s141
      %p145 = scmp.eq.s32.totalorder %s18, 0
      %p146 = por %p144, %p145
      %p147 = scmp.ne.s32.totalorder %s139, %s141
      %p148 = scmp.eq.s32.totalorder %s23, 1
      %p149 = por %p147, %p148
      %p150 = scmp.ne.s32.totalorder %s141, %s142
      %p151 = scmp.eq.s32.totalorder %s23, 0
      %p152 = por %p150, %p151
      %p153 = scmp.ne.s32.totalorder %s141, %s142
      %p154 = scmp.eq.s32.totalorder %s24, 1
      %p155 = por %p153, %p154
      %p157 = scmp.ne.s32.totalorder %s142, %s156
      %p158 = scmp.eq.s32.totalorder %s24, 0
      %p159 = por %p157, %p158
      %s161 = sadd.s32 %s160, 1
      %p164 = scmp.eq.s32.totalorder %s18, 1
      %p165 = scmp.ne.s32.totalorder %s160, %s162
      %p166 = scmp.eq.s32.totalorder %s18, 0
      %p167 = por %p165, %p166
      %p168 = scmp.ne.s32.totalorder %s160, %s162
      %p169 = scmp.eq.s32.totalorder %s23, 1
      %p170 = por %p168, %p169
      %p171 = scmp.ne.s32.totalorder %s162, %s163
      %p172 = scmp.eq.s32.totalorder %s23, 0
      %p173 = por %p171, %p172
      %p174 = scmp.ne.s32.totalorder %s162, %s163
      %p175 = scmp.eq.s32.totalorder %s24, 1
      %p176 = por %p174, %p175
      %p178 = scmp.ne.s32.totalorder %s163, %s177
      %p179 = scmp.eq.s32.totalorder %s24, 0
      %p180 = por %p178, %p179
      %s181 = ssub.s32 %s26, %s33
      %s182 = ssub.s32 %s25, %s37
      %s183 = sor.u32 %s181, %s182
      %p184 = scmp.eq.s32.totalorder %s183, 0
      %s186 = sadd.s32 %s185, 1
      %s187 = scalar_select %p184, %s185, %s186
      %p190 = pneg %p184
      %p191 = scmp.eq.s32.totalorder %s18, 1
      %p192 = por %p190, %p191
      %p193 = scmp.ne.s32.totalorder %s185, %s188
      %p194 = scmp.eq.s32.totalorder %s18, 0
      %p195 = por %p193, %p194
      %p196 = scmp.ne.s32.totalorder %s185, %s188
      %p197 = scmp.eq.s32.totalorder %s23, 1
      %p198 = por %p196, %p197
      %p199 = scmp.ne.s32.totalorder %s188, %s189
      %p200 = scmp.eq.s32.totalorder %s23, 0
      %p201 = por %p199, %p200
      %p202 = scmp.ne.s32.totalorder %s188, %s189
      %p203 = scmp.eq.s32.totalorder %s24, 1
      %p204 = por %p202, %p203
      %p206 = scmp.ne.s32.totalorder %s189, %s205
      %p207 = scmp.eq.s32.totalorder %s24, 0
      %p208 = por %p206, %p207
      %s209 = ssub.s32 %s25, %s37
      %p210 = scmp.eq.s32.totalorder %s209, 0
      %s212 = sadd.s32 %s211, 1
      %s213 = scalar_select %p210, %s211, %s212
      %p216 = pneg %p210
      %p217 = scmp.eq.s32.totalorder %s18, 1
      %p218 = por %p216, %p217
      %p219 = scmp.ne.s32.totalorder %s211, %s214
      %p220 = scmp.eq.s32.totalorder %s18, 0
      %p221 = por %p219, %p220
      %p222 = scmp.ne.s32.totalorder %s211, %s214
      %p223 = scmp.eq.s32.totalorder %s23, 1
      %p224 = por %p222, %p223
      %p225 = scmp.ne.s32.totalorder %s214, %s215
      %p226 = scmp.eq.s32.totalorder %s23, 0
      %p227 = por %p225, %p226
      %p228 = scmp.ne.s32.totalorder %s214, %s215
      %p229 = scmp.eq.s32.totalorder %s24, 1
      %p230 = por %p228, %p229
      %p232 = scmp.ne.s32.totalorder %s215, %s231
      %p233 = scmp.eq.s32.totalorder %s24, 0
      %p234 = por %p232, %p233
      %p235 = scmp.le.s32.totalorder 1, %s18
      %p236 = scmp.lt.s32.totalorder %s18, 3
      %p237 = pnand %p235, %p236
      %p238 = pneg %p237
      // Predicated region
      $region9: #{tpu_custom_call.1} parent=5 // pred_check
        _
      $region10: #{tpu_custom_call.1} parent=5 // pred_check_branch
        %240 = sbr.rel (%p237) target = $region12
      $region11: #{tpu_custom_call.1} parent=5 // pred_region
        %s241 = ssub.s32 %s18, 1
        // Predicated region
        $region13: #{tpu_custom_call.1} parent=11 // pred_check
          %p242 = pneg %p84
        $region14: #{tpu_custom_call.1} parent=11 // pred_check_branch
          %244 = sbr.rel (%p242) target = $region16
        $region15: #{tpu_custom_call.1} parent=11 // pred_region
          %p245 = scmp.lt.s32.totalorder %s27, 0
          %s246 = scalar_select %p245, %s27, 0
          %s247 = smul.addr %s246, 8
          %s248 = scalar_lea.vmem %s1, %s247
        $region16: #{tpu_custom_call.1} parent=11 // pred_fallthru
          _
        // Predicated region
        $region17: #{tpu_custom_call.1} parent=11 // pred_check
          %p249 = pneg %p110
        $region18: #{tpu_custom_call.1} parent=11 // pred_check_branch
          %251 = sbr.rel (%p249) target = $region20
        $region19: #{tpu_custom_call.1} parent=11 // pred_region
          %p252 = scmp.lt.s32.totalorder %s27, 0
          %s253 = scalar_select %p252, %s27, 0
          %s254 = smul.addr %s253, 8
          %s255 = scalar_lea.vmem %s2, %s254
        $region20: #{tpu_custom_call.1} parent=11 // pred_fallthru
          _
        // Predicated region
        $region21: #{tpu_custom_call.1} parent=11 // pred_check
          %p256 = pneg %p131
        $region22: #{tpu_custom_call.1} parent=11 // pred_check_branch
          %258 = sbr.rel (%p256) target = $region24
        $region23: #{tpu_custom_call.1} parent=11 // pred_region
          _
        $region24: #{tpu_custom_call.1} parent=11 // pred_fallthru
          _
        // Predicated region
        $region25: #{tpu_custom_call.1} parent=11 // pred_check
          %p259 = pneg %p152
        $region26: #{tpu_custom_call.1} parent=11 // pred_check_branch
          %261 = sbr.rel (%p259) target = $region28
        $region27: #{tpu_custom_call.1} parent=11 // pred_region
          _
        $region28: #{tpu_custom_call.1} parent=11 // pred_fallthru
          _
        // Predicated region
        $region29: #{tpu_custom_call.1} parent=11 // pred_check
          %p262 = pneg %p173
        $region30: #{tpu_custom_call.1} parent=11 // pred_check_branch
          %264 = sbr.rel (%p262) target = $region32
        $region31: #{tpu_custom_call.1} parent=11 // pred_region
          _
        $region32: #{tpu_custom_call.1} parent=11 // pred_fallthru
          _
      $region12: #{tpu_custom_call.1} parent=5 // pred_fallthru
        _
      %p265 = scmp.lt.s32.totalorder %s18, 2
      // Predicated region
      $region33: #{tpu_custom_call.1} parent=5 // pred_check
        %p266 = pneg %p265
      $region34: #{tpu_custom_call.1} parent=5 // pred_check_branch
        %268 = sbr.rel (%p266) target = $region36
      $region35: #{tpu_custom_call.1} parent=5 // pred_region
        // Predicated region
        $region37: #{tpu_custom_call.1} parent=35 // pred_check
          %p269 = pneg %p52
        $region38: #{tpu_custom_call.1} parent=35 // pred_check_branch
          %271 = sbr.rel (%p269) target = $region40
        $region39: #{tpu_custom_call.1} parent=35 // pred_region
          %s272 = smul.u32 16, %s26
          %p273 = scmp.lt.s32.totalorder %s272, 31
          %s274 = scalar_select %p273, %s272, 31
          %p275 = scmp.lt.s32.totalorder %s25, 0
          %s276 = scalar_select %p275, %s25, 0
          %s277 = sadd.s32 %s276, %s274
          %s278 = smul.addr %s277, 8
          %s279 = scalar_lea.vmem %s0, %s278
          %s280 = smul.u32 16, %s26
        $region40: #{tpu_custom_call.1} parent=35 // pred_fallthru
          _
      $region36: #{tpu_custom_call.1} parent=5 // pred_fallthru
        _
      %p281 = scmp.le.s32.totalorder 1, %s18
      %p282 = scmp.lt.s32.totalorder %s18, 3
      %p283 = pnand %p281, %p282
      %p284 = pneg %p283
      // Predicated region
      $region41: #{tpu_custom_call.1} parent=5 // pred_check
        _
      $region42: #{tpu_custom_call.1} parent=5 // pred_check_branch
        %286 = sbr.rel (%p283) target = $region44
      $region43: #{tpu_custom_call.1} parent=5 // pred_region
        %s287 = ssub.s32 %s18, 1
        %s288 = smul.u32 16, %s28
        %p289 = scmp.lt.s32.totalorder %s288, 31
        %s290 = scalar_select %p289, %s288, 31
        %p291 = scmp.lt.s32.totalorder %s27, 0
        %s292 = scalar_select %p291, %s27, 0
        %s293 = sadd.s32 %s292, %s290
        %s294 = smul.addr %s293, 8
        %s295 = scalar_lea.vmem %s0, %s294
        %p296 = pneg %p58
        %p297 = pneg %p55
        %p298 = scmp.lt.s32.totalorder %s27, 0
        %s299 = scalar_select %p298, %s27, 0
        %s300 = smul.addr %s299, 8
        %s301 = scalar_lea.vmem %s1, %s300
        %p302 = pneg %p84
        %p303 = pneg %p81
        %p304 = scmp.lt.s32.totalorder %s27, 0
        %s305 = scalar_select %p304, %s27, 0
        %s306 = smul.addr %s305, 8
        %s307 = scalar_lea.vmem %s2, %s306
        %p308 = pneg %p110
        %p309 = pneg %p107
        %p310 = pneg %p131
        %p311 = pneg %p128
        %p312 = pneg %p152
        %p313 = pneg %p149
        %p314 = pneg %p173
        %p315 = pneg %p170
        %p316 = pneg %p201
        %p317 = pneg %p198
        %s318 = sand.u32 %s188, 1
        %s319 = scalar_lea.sflag [#allocation6], %s318
        %s320 = sand.u32 %s188, 1
        %s321 = smul.addr %s320, 128
        %s322 = scalar_lea.vmem [#allocation5], %s321
        %p323 = pneg %p227
        %p324 = pneg %p224
        %s325 = smul.u32 16, %s28
        %p326 = scmp.lt.s32.totalorder %s325, 31
        %s327 = scalar_select %p326, %s325, 31
        %p328 = scmp.lt.s32.totalorder %s27, 0
        %s329 = scalar_select %p328, %s27, 0
        %s330 = sadd.s32 %s329, %s327
        %s331 = smul.addr %s330, 8
        %s332 = scalar_lea.vmem %s0, %s331
        %s333 = smul.u32 16, %s28
        %p334 = scmp.lt.s32.totalorder %s27, 0
        %s335 = scalar_select %p334, %s27, 0
        %s336 = smul.addr %s335, 8
        %s337 = scalar_lea.vmem %s1, %s336
        %p338 = scmp.lt.s32.totalorder %s27, 0
        %s339 = scalar_select %p338, %s27, 0
        %s340 = smul.addr %s339, 8
        %s341 = scalar_lea.vmem %s2, %s340
        %s342 = smul.u32 16, %s28
        %p343 = scmp.eq.s32.totalorder %s28, 0
        // Predicated region
        $region45: #{tpu_custom_call.1} parent=43 // pred_check
          %p344 = pneg %p343
        $region46: #{tpu_custom_call.1} parent=43 // pred_check_branch
          %346 = sbr.rel (%p344) target = $region48
        $region47: #{tpu_custom_call.1} parent=43 // pred_region
          %v347 = vld [vmem:[%s337] sm:$0xff]
          %vm348 = vcmask 261120
          %349 = vst.msk [vmem:[#allocation3] sm:$0xff] %vm348, %v347
          %v350 = vld [vmem:[%s341] sm:$0xff]
          %351 = vst.msk [vmem:[#allocation4] sm:$0xff] %vm348, %v350
        $region48: #{tpu_custom_call.1} parent=43 // pred_fallthru
          _
        %v352 = vld [vmem:[%s5] sm:$0x1]
        %v353 = vld [vmem:[%s332] sm:$0xff]
        %v354 = vld [vmem:[%s332 + $0x8] sm:$0xff]
        %v355 = vld [vmem:[%s332 + $0x10] sm:$0xff]
        %v356 = vld [vmem:[%s332 + $0x18] sm:$0xff]
        %v357 = vld [vmem:[%s332 + $0x20] sm:$0xff]
        %v358 = vld [vmem:[%s332 + $0x28] sm:$0xff]
        %v359 = vld [vmem:[%s332 + $0x30] sm:$0xff]
        %v360 = vld [vmem:[%s332 + $0x38] sm:$0xff]
        %v361 = vld [vmem:[%s3] sm:$0xff]
        %v362 = vld [vmem:[%s3 + $0x8] sm:$0xff]
        %v364 = vperm.slane %v352, 0
        %vm366 = vcmask 130048
        %v368 = vsel %vm366, %v353, 0
        %v371 = vsel %vm366, %v354, 0
        %v374 = vsel %vm366, %v355, 0
        %v377 = vsel %vm366, %v356, 0
        %v380 = vsel %vm366, %v357, 0
        %v383 = vsel %vm366, %v358, 0
        %v386 = vsel %vm366, %v359, 0
        %v389 = vsel %vm366, %v360, 0
        %391 = vmatpush.msra.mxu0 0.0
        %392 = vmatpush.msra.mxu0 0.0
        %393 = vmatpush.msra.mxu0 0.0
        %394 = vmatpush.msra.mxu0 0.0
        %395 = vmatpush.msra.mxu0 0.0
        %396 = vmatpush.msra.mxu0 0.0
        %397 = vmatpush.msra.mxu0 0.0
        %398 = vmatpush.msra.mxu0 0.0
        %399 = vmatpush.msra.mxu0 0.0
        %400 = vmatpush.msra.mxu0 0.0
        %401 = vmatpush.msra.mxu0 0.0
        %402 = vmatpush.msra.mxu0 0.0
        %403 = vmatpush.msra.mxu0 0.0
        %404 = vmatpush.msra.mxu0 0.0
        %405 = vmatpush.msra.mxu0 %v362
        %406 = vmatpush.msra.mxu0 %v361
        %407 = vmatmul.f32.gmra.mxu0 %v368
        %v408 = vpop.f32.mrf.mxu0
        %v409 = vadd.f32 %v364, %v408
        %410 = vmatmul.f32.gmra.mxu0 %v371
        %v411 = vpop.f32.mrf.mxu0
        %v412 = vadd.f32 %v364, %v411
        %413 = vmatmul.f32.gmra.mxu0 %v374
        %v414 = vpop.f32.mrf.mxu0
        %v415 = vadd.f32 %v364, %v414
        %416 = vmatmul.f32.gmra.mxu0 %v377
        %v417 = vpop.f32.mrf.mxu0
        %v418 = vadd.f32 %v364, %v417
        %419 = vmatmul.f32.gmra.mxu0 %v380
        %v420 = vpop.f32.mrf.mxu0
        %v421 = vadd.f32 %v364, %v420
        %422 = vmatmul.f32.gmra.mxu0 %v383
        %v423 = vpop.f32.mrf.mxu0
        %v424 = vadd.f32 %v364, %v423
        %425 = vmatmul.f32.gmra.mxu0 %v386
        %v426 = vpop.f32.mrf.mxu0
        %v427 = vadd.f32 %v364, %v426
        %428 = vmatmul.f32.gmra.mxu0 %v389
        %v429 = vpop.f32.mrf.mxu0
        %v430 = vadd.f32 %v364, %v429
        %431 = vdwg.mxu0
        %432 = vst [vmem:[#allocation2] sm:$0xff] %v409
        %433 = vst [vmem:[#allocation2 + $0x8] sm:$0xff] %v412
        %434 = vst [vmem:[#allocation2 + $0x10] sm:$0xff] %v415
        %435 = vst [vmem:[#allocation2 + $0x18] sm:$0xff] %v418
        %436 = vst [vmem:[#allocation2 + $0x20] sm:$0xff] %v421
        %437 = vst [vmem:[#allocation2 + $0x28] sm:$0xff] %v424
        %438 = vst [vmem:[#allocation2 + $0x30] sm:$0xff] %v427
        %439 = vst [vmem:[#allocation2 + $0x38] sm:$0xff] %v430
        %s440 = scalar_lea.vmem %s332, 64
        %v441 = vld [vmem:[%s440] sm:$0xff]
        %v442 = vld [vmem:[%s440 + $0x8] sm:$0xff]
        %v443 = vld [vmem:[%s440 + $0x10] sm:$0xff]
        %v444 = vld [vmem:[%s440 + $0x18] sm:$0xff]
        %v445 = vld [vmem:[%s440 + $0x20] sm:$0xff]
        %v446 = vld [vmem:[%s440 + $0x28] sm:$0xff]
        %v447 = vld [vmem:[%s440 + $0x30] sm:$0xff]
        %v448 = vld [vmem:[%s440 + $0x38] sm:$0xff]
        %v449 = vld [vmem:[%s3] sm:$0xff]
        %v450 = vld [vmem:[%s3 + $0x8] sm:$0xff]
        %v452 = vsel %vm366, %v441, 0
        %v455 = vsel %vm366, %v442, 0
        %v458 = vsel %vm366, %v443, 0
        %v461 = vsel %vm366, %v444, 0
        %v464 = vsel %vm366, %v445, 0
        %v467 = vsel %vm366, %v446, 0
        %v470 = vsel %vm366, %v447, 0
        %v473 = vsel %vm366, %v448, 0
        %475 = vmatpush.msra.mxu0 0.0
        %476 = vmatpush.msra.mxu0 0.0
        %477 = vmatpush.msra.mxu0 0.0
        %478 = vmatpush.msra.mxu0 0.0
        %479 = vmatpush.msra.mxu0 0.0
        %480 = vmatpush.msra.mxu0 0.0
        %481 = vmatpush.msra.mxu0 0.0
        %482 = vmatpush.msra.mxu0 0.0
        %483 = vmatpush.msra.mxu0 0.0
        %484 = vmatpush.msra.mxu0 0.0
        %485 = vmatpush.msra.mxu0 0.0
        %486 = vmatpush.msra.mxu0 0.0
        %487 = vmatpush.msra.mxu0 0.0
        %488 = vmatpush.msra.mxu0 0.0
        %489 = vmatpush.msra.mxu0 %v450
        %490 = vmatpush.msra.mxu0 %v449
        %491 = vmatmul.f32.gmra.mxu0 %v452
        %v492 = vpop.f32.mrf.mxu0
        %v493 = vadd.f32 %v364, %v492
        %494 = vmatmul.f32.gmra.mxu0 %v455
        %v495 = vpop.f32.mrf.mxu0
        %v496 = vadd.f32 %v364, %v495
        %497 = vmatmul.f32.gmra.mxu0 %v458
        %v498 = vpop.f32.mrf.mxu0
        %v499 = vadd.f32 %v364, %v498
        %500 = vmatmul.f32.gmra.mxu0 %v461
        %v501 = vpop.f32.mrf.mxu0
        %v502 = vadd.f32 %v364, %v501
        %503 = vmatmul.f32.gmra.mxu0 %v464
        %v504 = vpop.f32.mrf.mxu0
        %v505 = vadd.f32 %v364, %v504
        %506 = vmatmul.f32.gmra.mxu0 %v467
        %v507 = vpop.f32.mrf.mxu0
        %v508 = vadd.f32 %v364, %v507
        %509 = vmatmul.f32.gmra.mxu0 %v470
        %v510 = vpop.f32.mrf.mxu0
        %v511 = vadd.f32 %v364, %v510
        %512 = vmatmul.f32.gmra.mxu0 %v473
        %v513 = vpop.f32.mrf.mxu0
        %v514 = vadd.f32 %v364, %v513
        %515 = vdwg.mxu0
        %s516 = scalar_lea.vmem [#allocation2], 64
        %517 = vst [vmem:[%s516] sm:$0xff] %v493
        %518 = vst [vmem:[%s516 + $0x8] sm:$0xff] %v496
        %519 = vst [vmem:[%s516 + $0x10] sm:$0xff] %v499
        %520 = vst [vmem:[%s516 + $0x18] sm:$0xff] %v502
        %521 = vst [vmem:[%s516 + $0x20] sm:$0xff] %v505
        %522 = vst [vmem:[%s516 + $0x28] sm:$0xff] %v508
        %523 = vst [vmem:[%s516 + $0x30] sm:$0xff] %v511
        %524 = vst [vmem:[%s516 + $0x38] sm:$0xff] %v514
        %v525 = vld [vmem:[#allocation3] sm:$0xff]
        %v526 = vld [vmem:[#allocation4] sm:$0xff]
        %v527 = vld [vmem:[#allocation2] sm:$0xff]
        %v528 = vld [vmem:[%s4] sm:$0xff]
        %v529 = vld [vmem:[%s4 + $0x8] sm:$0xff]
        %v530 = vld [vmem:[%s4 + $0x10] sm:$0xff]
        %v531 = vld [vmem:[%s4 + $0x18] sm:$0xff]
        %vm532 = vcmask 261120
        %v534 = vsel %vm532, %v525, 0
        %536 = vmatpush.msra.mxu0 0.0
        %537 = vmatpush.msra.mxu0 0.0
        %538 = vmatpush.msra.mxu0 0.0
        %539 = vmatpush.msra.mxu0 0.0
        %540 = vmatpush.msra.mxu0 0.0
        %541 = vmatpush.msra.mxu0 0.0
        %542 = vmatpush.msra.mxu0 0.0
        %543 = vmatpush.msra.mxu0 0.0
        %544 = vmatpush.msra.mxu0 0.0
        %545 = vmatpush.msra.mxu0 0.0
        %546 = vmatpush.msra.mxu0 0.0
        %547 = vmatpush.msra.mxu0 0.0
        %548 = vmatpush.msra.mxu0 %v531
        %549 = vmatpush.msra.mxu0 %v530
        %550 = vmatpush.msra.mxu0 %v529
        %551 = vmatpush.msra.mxu0 %v528
        %552 = vmatmul.f32.gmra.mxu0 %v534
        %v553 = vpop.f32.mrf.mxu0
        %v554 = vadd.f32 0.0, %v553
        %555 = vdwg.mxu0
        %v556 = vadd.f32 %v527, %v554
        %v557 = vxor.u32 %v556, 2147483648
        %v558 = vmul.f32 %v557, 1.442695
        %v559 = vpow.pop %v558
        %v560 = vadd.f32 %v559, 1.0
        %v561 = vrcp.pop %v560
        %v562 = vmul.f32 %v560, %v561
        %v563 = vsub.f32 1.0, %v562
        %v564 = vmul.f32 %v561, %v563
        %v565 = vadd.f32 %v561, %v564
        %vm566 = vweird.f32 %v560
        %vm567 = vweird.f32 %v561
        %vm568 = vmor %vm566, %vm567
        %v569 = vsel %vm568, %v561, %v565
        %v570 = vand.u32 2147483647, %v560
        %vm571 = vcmp.eq.f32.partialorder %v570, 8.507059e+37
        %v572 = vand.u32 %v560, 2147483648
        %v573 = vor.u32 1.1754944e-38, %v572
        %v574 = vsel %vm571, %v573, %v569
        %v575 = vmul.f32 1.0, %v574
        %v576 = vtanh.pop %v556
        %578 = vrot.lane.b32.xlu0 %v526, 32
        %v579 = vpop.permute.xlu0 %578
        %v581 = vmul.f32 %v575, %v579
        %583 = vrot.lane.b32.xlu0 %v576, 32
        %v584 = vpop.permute.xlu0 %583
        %v586 = vmul.f32 %v575, %v584
        %588 = vrot.lane.b32.xlu0 %v586, 32
        %v589 = vpop.permute.xlu0 %588
        %v591 = vadd.f32 %v581, %v589
        %v592 = vtanh.pop %v591
        %594 = vrot.lane.b32.xlu0 %v592, 32
        %v595 = vpop.permute.xlu0 %594
        %v597 = vmul.f32 %v575, %v595
        %599 = vrot.lane.b32.xlu0 %v597, 64
        %v600 = vpop.permute.xlu0 %599
        %602 = vst.msk [vmem:[%s322] sm:$0xff] %vm532, %v600
        %s603 = scalar_lea.vmem [#allocation2], 8
        %v604 = vld [vmem:[%s603] sm:$0xff]
        %v605 = vld [vmem:[%s4] sm:$0xff]
        %v606 = vld [vmem:[%s4 + $0x8] sm:$0xff]
        %v607 = vld [vmem:[%s4 + $0x10] sm:$0xff]
        %v608 = vld [vmem:[%s4 + $0x18] sm:$0xff]
        %v609 = vsel %vm532, %v600, 0
        %611 = vmatpush.msra.mxu0 0.0
        %612 = vmatpush.msra.mxu0 0.0
        %613 = vmatpush.msra.mxu0 0.0
        %614 = vmatpush.msra.mxu0 0.0
        %615 = vmatpush.msra.mxu0 0.0
        %616 = vmatpush.msra.mxu0 0.0
        %617 = vmatpush.msra.mxu0 0.0
        %618 = vmatpush.msra.mxu0 0.0
        %619 = vmatpush.msra.mxu0 0.0
        %620 = vmatpush.msra.mxu0 0.0
        %621 = vmatpush.msra.mxu0 0.0
        %622 = vmatpush.msra.mxu0 0.0
        %623 = vmatpush.msra.mxu0 %v608
        %624 = vmatpush.msra.mxu0 %v607
        %625 = vmatpush.msra.mxu0 %v606
        %626 = vmatpush.msra.mxu0 %v605
        %627 = vmatmul.f32.gmra.mxu0 %v609
        %v628 = vpop.f32.mrf.mxu0
        %v629 = vadd.f32 0.0, %v628
        %630 = vdwg.mxu0
        %v631 = vadd.f32 %v604, %v629
        %v632 = vxor.u32 %v631, 2147483648
        %v633 = vmul.f32 %v632, 1.442695
        %v634 = vpow.pop %v633
        %v635 = vadd.f32 %v634, 1.0
        %v636 = vrcp.pop %v635
        %v637 = vmul.f32 %v635, %v636
        %v638 = vsub.f32 1.0, %v637
        %v639 = vmul.f32 %v636, %v638
        %v640 = vadd.f32 %v636, %v639
        %vm641 = vweird.f32 %v635
        %vm642 = vweird.f32 %v636
        %vm643 = vmor %vm641, %vm642
        %v644 = vsel %vm643, %v636, %v640
        %v645 = vand.u32 2147483647, %v635
        %vm646 = vcmp.eq.f32.partialorder %v645, 8.507059e+37
        %v647 = vand.u32 %v635, 2147483648
        %v648 = vor.u32 1.1754944e-38, %v647
        %v649 = vsel %vm646, %v648, %v644
        %v650 = vmul.f32 1.0, %v649
        %v651 = vtanh.pop %v631
        %v652 = vmul.f32 %v650, %v591
        %654 = vrot.lane.b32.xlu0 %v651, 32
        %v655 = vpop.permute.xlu0 %654
        %v657 = vmul.f32 %v650, %v655
        %659 = vrot.lane.b32.xlu0 %v657, 32
        %v660 = vpop.permute.xlu0 %659
        %v662 = vadd.f32 %v652, %v660
        %v663 = vtanh.pop %v662
        %665 = vrot.lane.b32.xlu0 %v663, 32
        %v666 = vpop.permute.xlu0 %665
        %v668 = vmul.f32 %v650, %v666
        %670 = vrot.lane.b32.xlu0 %v668, 64
        %v671 = vpop.permute.xlu0 %670
        %s673 = scalar_lea.vmem %s322, 8 [#allocation5]
        %674 = vst.msk [vmem:[%s673] sm:$0xff] %vm532, %v671
        %s675 = scalar_lea.vmem [#allocation2], 16
        %v676 = vld [vmem:[%s675] sm:$0xff]
        %v677 = vld [vmem:[%s4] sm:$0xff]
        %v678 = vld [vmem:[%s4 + $0x8] sm:$0xff]
        %v679 = vld [vmem:[%s4 + $0x10] sm:$0xff]
        %v680 = vld [vmem:[%s4 + $0x18] sm:$0xff]
        %v681 = vsel %vm532, %v671, 0
        %683 = vmatpush.msra.mxu0 0.0
        %684 = vmatpush.msra.mxu0 0.0
        %685 = vmatpush.msra.mxu0 0.0
        %686 = vmatpush.msra.mxu0 0.0
        %687 = vmatpush.msra.mxu0 0.0
        %688 = vmatpush.msra.mxu0 0.0
        %689 = vmatpush.msra.mxu0 0.0
        %690 = vmatpush.msra.mxu0 0.0
        %691 = vmatpush.msra.mxu0 0.0
        %692 = vmatpush.msra.mxu0 0.0
        %693 = vmatpush.msra.mxu0 0.0
        %694 = vmatpush.msra.mxu0 0.0
        %695 = vmatpush.msra.mxu0 %v680
        %696 = vmatpush.msra.mxu0 %v679
        %697 = vmatpush.msra.mxu0 %v678
        %698 = vmatpush.msra.mxu0 %v677
        %699 = vmatmul.f32.gmra.mxu0 %v681
        %v700 = vpop.f32.mrf.mxu0
        %v701 = vadd.f32 0.0, %v700
        %702 = vdwg.mxu0
        %v703 = vadd.f32 %v676, %v701
        %v704 = vxor.u32 %v703, 2147483648
        %v705 = vmul.f32 %v704, 1.442695
        %v706 = vpow.pop %v705
        %v707 = vadd.f32 %v706, 1.0
        %v708 = vrcp.pop %v707
        %v709 = vmul.f32 %v707, %v708
        %v710 = vsub.f32 1.0, %v709
        %v711 = vmul.f32 %v708, %v710
        %v712 = vadd.f32 %v708, %v711
        %vm713 = vweird.f32 %v707
        %vm714 = vweird.f32 %v708
        %vm715 = vmor %vm713, %vm714
        %v716 = vsel %vm715, %v708, %v712
        %v717 = vand.u32 2147483647, %v707
        %vm718 = vcmp.eq.f32.partialorder %v717, 8.507059e+37
        %v719 = vand.u32 %v707, 2147483648
        %v720 = vor.u32 1.1754944e-38, %v719
        %v721 = vsel %vm718, %v720, %v716
        %v722 = vmul.f32 1.0, %v721
        %v723 = vtanh.pop %v703
        %v724 = vmul.f32 %v722, %v662
        %726 = vrot.lane.b32.xlu0 %v723, 32
        %v727 = vpop.permute.xlu0 %726
        %v729 = vmul.f32 %v722, %v727
        %731 = vrot.lane.b32.xlu0 %v729, 32
        %v732 = vpop.permute.xlu0 %731
        %v734 = vadd.f32 %v724, %v732
        %v735 = vtanh.pop %v734
        %737 = vrot.lane.b32.xlu0 %v735, 32
        %v738 = vpop.permute.xlu0 %737
        %v740 = vmul.f32 %v722, %v738
        %742 = vrot.lane.b32.xlu0 %v740, 64
        %v743 = vpop.permute.xlu0 %742
        %s745 = scalar_lea.vmem %s322, 16 [#allocation5]
        %746 = vst.msk [vmem:[%s745] sm:$0xff] %vm532, %v743
        %s747 = scalar_lea.vmem [#allocation2], 24
        %v748 = vld [vmem:[%s747] sm:$0xff]
        %v749 = vld [vmem:[%s4] sm:$0xff]
        %v750 = vld [vmem:[%s4 + $0x8] sm:$0xff]
        %v751 = vld [vmem:[%s4 + $0x10] sm:$0xff]
        %v752 = vld [vmem:[%s4 + $0x18] sm:$0xff]
        %v753 = vsel %vm532, %v743, 0
        %755 = vmatpush.msra.mxu0 0.0
        %756 = vmatpush.msra.mxu0 0.0
        %757 = vmatpush.msra.mxu0 0.0
        %758 = vmatpush.msra.mxu0 0.0
        %759 = vmatpush.msra.mxu0 0.0
        %760 = vmatpush.msra.mxu0 0.0
        %761 = vmatpush.msra.mxu0 0.0
        %762 = vmatpush.msra.mxu0 0.0
        %763 = vmatpush.msra.mxu0 0.0
        %764 = vmatpush.msra.mxu0 0.0
        %765 = vmatpush.msra.mxu0 0.0
        %766 = vmatpush.msra.mxu0 0.0
        %767 = vmatpush.msra.mxu0 %v752
        %768 = vmatpush.msra.mxu0 %v751
        %769 = vmatpush.msra.mxu0 %v750
        %770 = vmatpush.msra.mxu0 %v749
        %771 = vmatmul.f32.gmra.mxu0 %v753
        %v772 = vpop.f32.mrf.mxu0
        %v773 = vadd.f32 0.0, %v772
        %774 = vdwg.mxu0
        %v775 = vadd.f32 %v748, %v773
        %v776 = vxor.u32 %v775, 2147483648
        %v777 = vmul.f32 %v776, 1.442695
        %v778 = vpow.pop %v777
        %v779 = vadd.f32 %v778, 1.0
        %v780 = vrcp.pop %v779
        %v781 = vmul.f32 %v779, %v780
        %v782 = vsub.f32 1.0, %v781
        %v783 = vmul.f32 %v780, %v782
        %v784 = vadd.f32 %v780, %v783
        %vm785 = vweird.f32 %v779
        %vm786 = vweird.f32 %v780
        %vm787 = vmor %vm785, %vm786
        %v788 = vsel %vm787, %v780, %v784
        %v789 = vand.u32 2147483647, %v779
        %vm790 = vcmp.eq.f32.partialorder %v789, 8.507059e+37
        %v791 = vand.u32 %v779, 2147483648
        %v792 = vor.u32 1.1754944e-38, %v791
        %v793 = vsel %vm790, %v792, %v788
        %v794 = vmul.f32 1.0, %v793
        %v795 = vtanh.pop %v775
        %v796 = vmul.f32 %v794, %v734
        %798 = vrot.lane.b32.xlu0 %v795, 32
        %v799 = vpop.permute.xlu0 %798
        %v801 = vmul.f32 %v794, %v799
        %803 = vrot.lane.b32.xlu0 %v801, 32
        %v804 = vpop.permute.xlu0 %803
        %v806 = vadd.f32 %v796, %v804
        %v807 = vtanh.pop %v806
        %809 = vrot.lane.b32.xlu0 %v807, 32
        %v810 = vpop.permute.xlu0 %809
        %v812 = vmul.f32 %v794, %v810
        %814 = vrot.lane.b32.xlu0 %v812, 64
        %v815 = vpop.permute.xlu0 %814
        %s817 = scalar_lea.vmem %s322, 24 [#allocation5]
        %818 = vst.msk [vmem:[%s817] sm:$0xff] %vm532, %v815
        %s819 = scalar_lea.vmem [#allocation2], 32
        %v820 = vld [vmem:[%s819] sm:$0xff]
        %v821 = vld [vmem:[%s4] sm:$0xff]
        %v822 = vld [vmem:[%s4 + $0x8] sm:$0xff]
        %v823 = vld [vmem:[%s4 + $0x10] sm:$0xff]
        %v824 = vld [vmem:[%s4 + $0x18] sm:$0xff]
        %v825 = vsel %vm532, %v815, 0
        %827 = vmatpush.msra.mxu0 0.0
        %828 = vmatpush.msra.mxu0 0.0
        %829 = vmatpush.msra.mxu0 0.0
        %830 = vmatpush.msra.mxu0 0.0
        %831 = vmatpush.msra.mxu0 0.0
        %832 = vmatpush.msra.mxu0 0.0
        %833 = vmatpush.msra.mxu0 0.0
        %834 = vmatpush.msra.mxu0 0.0
        %835 = vmatpush.msra.mxu0 0.0
        %836 = vmatpush.msra.mxu0 0.0
        %837 = vmatpush.msra.mxu0 0.0
        %838 = vmatpush.msra.mxu0 0.0
        %839 = vmatpush.msra.mxu0 %v824
        %840 = vmatpush.msra.mxu0 %v823
        %841 = vmatpush.msra.mxu0 %v822
        %842 = vmatpush.msra.mxu0 %v821
        %843 = vmatmul.f32.gmra.mxu0 %v825
        %v844 = vpop.f32.mrf.mxu0
        %v845 = vadd.f32 0.0, %v844
        %846 = vdwg.mxu0
        %v847 = vadd.f32 %v820, %v845
        %v848 = vxor.u32 %v847, 2147483648
        %v849 = vmul.f32 %v848, 1.442695
        %v850 = vpow.pop %v849
        %v851 = vadd.f32 %v850, 1.0
        %v852 = vrcp.pop %v851
        %v853 = vmul.f32 %v851, %v852
        %v854 = vsub.f32 1.0, %v853
        %v855 = vmul.f32 %v852, %v854
        %v856 = vadd.f32 %v852, %v855
        %vm857 = vweird.f32 %v851
        %vm858 = vweird.f32 %v852
        %vm859 = vmor %vm857, %vm858
        %v860 = vsel %vm859, %v852, %v856
        %v861 = vand.u32 2147483647, %v851
        %vm862 = vcmp.eq.f32.partialorder %v861, 8.507059e+37
        %v863 = vand.u32 %v851, 2147483648
        %v864 = vor.u32 1.1754944e-38, %v863
        %v865 = vsel %vm862, %v864, %v860
        %v866 = vmul.f32 1.0, %v865
        %v867 = vtanh.pop %v847
        %v868 = vmul.f32 %v866, %v806
        %870 = vrot.lane.b32.xlu0 %v867, 32
        %v871 = vpop.permute.xlu0 %870
        %v873 = vmul.f32 %v866, %v871
        %875 = vrot.lane.b32.xlu0 %v873, 32
        %v876 = vpop.permute.xlu0 %875
        %v878 = vadd.f32 %v868, %v876
        %v879 = vtanh.pop %v878
        %881 = vrot.lane.b32.xlu0 %v879, 32
        %v882 = vpop.permute.xlu0 %881
        %v884 = vmul.f32 %v866, %v882
        %886 = vrot.lane.b32.xlu0 %v884, 64
        %v887 = vpop.permute.xlu0 %886
        %s889 = scalar_lea.vmem %s322, 32 [#allocation5]
        %890 = vst.msk [vmem:[%s889] sm:$0xff] %vm532, %v887
        %s891 = scalar_lea.vmem [#allocation2], 40
        %v892 = vld [vmem:[%s891] sm:$0xff]
        %v893 = vld [vmem:[%s4] sm:$0xff]
        %v894 = vld [vmem:[%s4 + $0x8] sm:$0xff]
        %v895 = vld [vmem:[%s4 + $0x10] sm:$0xff]
        %v896 = vld [vmem:[%s4 + $0x18] sm:$0xff]
        %v897 = vsel %vm532, %v887, 0
        %899 = vmatpush.msra.mxu0 0.0
        %900 = vmatpush.msra.mxu0 0.0
        %901 = vmatpush.msra.mxu0 0.0
        %902 = vmatpush.msra.mxu0 0.0
        %903 = vmatpush.msra.mxu0 0.0
        %904 = vmatpush.msra.mxu0 0.0
        %905 = vmatpush.msra.mxu0 0.0
        %906 = vmatpush.msra.mxu0 0.0
        %907 = vmatpush.msra.mxu0 0.0
        %908 = vmatpush.msra.mxu0 0.0
        %909 = vmatpush.msra.mxu0 0.0
        %910 = vmatpush.msra.mxu0 0.0
        %911 = vmatpush.msra.mxu0 %v896
        %912 = vmatpush.msra.mxu0 %v895
        %913 = vmatpush.msra.mxu0 %v894
        %914 = vmatpush.msra.mxu0 %v893
        %915 = vmatmul.f32.gmra.mxu0 %v897
        %v916 = vpop.f32.mrf.mxu0
        %v917 = vadd.f32 0.0, %v916
        %918 = vdwg.mxu0
        %v919 = vadd.f32 %v892, %v917
        %v920 = vxor.u32 %v919, 2147483648
        %v921 = vmul.f32 %v920, 1.442695
        %v922 = vpow.pop %v921
        %v923 = vadd.f32 %v922, 1.0
        %v924 = vrcp.pop %v923
        %v925 = vmul.f32 %v923, %v924
        %v926 = vsub.f32 1.0, %v925
        %v927 = vmul.f32 %v924, %v926
        %v928 = vadd.f32 %v924, %v927
        %vm929 = vweird.f32 %v923
        %vm930 = vweird.f32 %v924
        %vm931 = vmor %vm929, %vm930
        %v932 = vsel %vm931, %v924, %v928
        %v933 = vand.u32 2147483647, %v923
        %vm934 = vcmp.eq.f32.partialorder %v933, 8.507059e+37
        %v935 = vand.u32 %v923, 2147483648
        %v936 = vor.u32 1.1754944e-38, %v935
        %v937 = vsel %vm934, %v936, %v932
        %v938 = vmul.f32 1.0, %v937
        %v939 = vtanh.pop %v919
        %v940 = vmul.f32 %v938, %v878
        %942 = vrot.lane.b32.xlu0 %v939, 32
        %v943 = vpop.permute.xlu0 %942
        %v945 = vmul.f32 %v938, %v943
        %947 = vrot.lane.b32.xlu0 %v945, 32
        %v948 = vpop.permute.xlu0 %947
        %v950 = vadd.f32 %v940, %v948
        %v951 = vtanh.pop %v950
        %953 = vrot.lane.b32.xlu0 %v951, 32
        %v954 = vpop.permute.xlu0 %953
        %v956 = vmul.f32 %v938, %v954
        %958 = vrot.lane.b32.xlu0 %v956, 64
        %v959 = vpop.permute.xlu0 %958
        %s961 = scalar_lea.vmem %s322, 40 [#allocation5]
        %962 = vst.msk [vmem:[%s961] sm:$0xff] %vm532, %v959
        %s963 = scalar_lea.vmem [#allocation2], 48
        %v964 = vld [vmem:[%s963] sm:$0xff]
        %v965 = vld [vmem:[%s4] sm:$0xff]
        %v966 = vld [vmem:[%s4 + $0x8] sm:$0xff]
        %v967 = vld [vmem:[%s4 + $0x10] sm:$0xff]
        %v968 = vld [vmem:[%s4 + $0x18] sm:$0xff]
        %v969 = vsel %vm532, %v959, 0
        %971 = vmatpush.msra.mxu0 0.0
        %972 = vmatpush.msra.mxu0 0.0
        %973 = vmatpush.msra.mxu0 0.0
        %974 = vmatpush.msra.mxu0 0.0
        %975 = vmatpush.msra.mxu0 0.0
        %976 = vmatpush.msra.mxu0 0.0
        %977 = vmatpush.msra.mxu0 0.0
        %978 = vmatpush.msra.mxu0 0.0
        %979 = vmatpush.msra.mxu0 0.0
        %980 = vmatpush.msra.mxu0 0.0
        %981 = vmatpush.msra.mxu0 0.0
        %982 = vmatpush.msra.mxu0 0.0
        %983 = vmatpush.msra.mxu0 %v968
        %984 = vmatpush.msra.mxu0 %v967
        %985 = vmatpush.msra.mxu0 %v966
        %986 = vmatpush.msra.mxu0 %v965
        %987 = vmatmul.f32.gmra.mxu0 %v969
        %v988 = vpop.f32.mrf.mxu0
        %v989 = vadd.f32 0.0, %v988
        %990 = vdwg.mxu0
        %v991 = vadd.f32 %v964, %v989
        %v992 = vxor.u32 %v991, 2147483648
        %v993 = vmul.f32 %v992, 1.442695
        %v994 = vpow.pop %v993
        %v995 = vadd.f32 %v994, 1.0
        %v996 = vrcp.pop %v995
        %v997 = vmul.f32 %v995, %v996
        %v998 = vsub.f32 1.0, %v997
        %v999 = vmul.f32 %v996, %v998
        %v1000 = vadd.f32 %v996, %v999
        %vm1001 = vweird.f32 %v995
        %vm1002 = vweird.f32 %v996
        %vm1003 = vmor %vm1001, %vm1002
        %v1004 = vsel %vm1003, %v996, %v1000
        %v1005 = vand.u32 2147483647, %v995
        %vm1006 = vcmp.eq.f32.partialorder %v1005, 8.507059e+37
        %v1007 = vand.u32 %v995, 2147483648
        %v1008 = vor.u32 1.1754944e-38, %v1007
        %v1009 = vsel %vm1006, %v1008, %v1004
        %v1010 = vmul.f32 1.0, %v1009
        %v1011 = vtanh.pop %v991
        %v1012 = vmul.f32 %v1010, %v950
        %1014 = vrot.lane.b32.xlu0 %v1011, 32
        %v1015 = vpop.permute.xlu0 %1014
        %v1017 = vmul.f32 %v1010, %v1015
        %1019 = vrot.lane.b32.xlu0 %v1017, 32
        %v1020 = vpop.permute.xlu0 %1019
        %v1022 = vadd.f32 %v1012, %v1020
        %v1023 = vtanh.pop %v1022
        %1025 = vrot.lane.b32.xlu0 %v1023, 32
        %v1026 = vpop.permute.xlu0 %1025
        %v1028 = vmul.f32 %v1010, %v1026
        %1030 = vrot.lane.b32.xlu0 %v1028, 64
        %v1031 = vpop.permute.xlu0 %1030
        %s1033 = scalar_lea.vmem %s322, 48 [#allocation5]
        %1034 = vst.msk [vmem:[%s1033] sm:$0xff] %vm532, %v1031
        %s1035 = scalar_lea.vmem [#allocation2], 56
        %v1036 = vld [vmem:[%s1035] sm:$0xff]
        %v1037 = vld [vmem:[%s4] sm:$0xff]
        %v1038 = vld [vmem:[%s4 + $0x8] sm:$0xff]
        %v1039 = vld [vmem:[%s4 + $0x10] sm:$0xff]
        %v1040 = vld [vmem:[%s4 + $0x18] sm:$0xff]
        %v1041 = vsel %vm532, %v1031, 0
        %1043 = vmatpush.msra.mxu0 0.0
        %1044 = vmatpush.msra.mxu0 0.0
        %1045 = vmatpush.msra.mxu0 0.0
        %1046 = vmatpush.msra.mxu0 0.0
        %1047 = vmatpush.msra.mxu0 0.0
        %1048 = vmatpush.msra.mxu0 0.0
        %1049 = vmatpush.msra.mxu0 0.0
        %1050 = vmatpush.msra.mxu0 0.0
        %1051 = vmatpush.msra.mxu0 0.0
        %1052 = vmatpush.msra.mxu0 0.0
        %1053 = vmatpush.msra.mxu0 0.0
        %1054 = vmatpush.msra.mxu0 0.0
        %1055 = vmatpush.msra.mxu0 %v1040
        %1056 = vmatpush.msra.mxu0 %v1039
        %1057 = vmatpush.msra.mxu0 %v1038
        %1058 = vmatpush.msra.mxu0 %v1037
        %1059 = vmatmul.f32.gmra.mxu0 %v1041
        %v1060 = vpop.f32.mrf.mxu0
        %v1061 = vadd.f32 0.0, %v1060
        %1062 = vdwg.mxu0
        %v1063 = vadd.f32 %v1036, %v1061
        %v1064 = vxor.u32 %v1063, 2147483648
        %v1065 = vmul.f32 %v1064, 1.442695
        %v1066 = vpow.pop %v1065
        %v1067 = vadd.f32 %v1066, 1.0
        %v1068 = vrcp.pop %v1067
        %v1069 = vmul.f32 %v1067, %v1068
        %v1070 = vsub.f32 1.0, %v1069
        %v1071 = vmul.f32 %v1068, %v1070
        %v1072 = vadd.f32 %v1068, %v1071
        %vm1073 = vweird.f32 %v1067
        %vm1074 = vweird.f32 %v1068
        %vm1075 = vmor %vm1073, %vm1074
        %v1076 = vsel %vm1075, %v1068, %v1072
        %v1077 = vand.u32 2147483647, %v1067
        %vm1078 = vcmp.eq.f32.partialorder %v1077, 8.507059e+37
        %v1079 = vand.u32 %v1067, 2147483648
        %v1080 = vor.u32 1.1754944e-38, %v1079
        %v1081 = vsel %vm1078, %v1080, %v1076
        %v1082 = vmul.f32 1.0, %v1081
        %v1083 = vtanh.pop %v1063
        %v1084 = vmul.f32 %v1082, %v1022
        %1086 = vrot.lane.b32.xlu0 %v1083, 32
        %v1087 = vpop.permute.xlu0 %1086
        %v1089 = vmul.f32 %v1082, %v1087
        %1091 = vrot.lane.b32.xlu0 %v1089, 32
        %v1092 = vpop.permute.xlu0 %1091
        %v1094 = vadd.f32 %v1084, %v1092
        %v1095 = vtanh.pop %v1094
        %1097 = vrot.lane.b32.xlu0 %v1095, 32
        %v1098 = vpop.permute.xlu0 %1097
        %v1100 = vmul.f32 %v1082, %v1098
        %1102 = vrot.lane.b32.xlu0 %v1100, 64
        %v1103 = vpop.permute.xlu0 %1102
        %s1105 = scalar_lea.vmem %s322, 56 [#allocation5]
        %1106 = vst.msk [vmem:[%s1105] sm:$0xff] %vm532, %v1103
        %v1107 = vld [vmem:[%s516] sm:$0xff]
        %v1108 = vld [vmem:[%s4] sm:$0xff]
        %v1109 = vld [vmem:[%s4 + $0x8] sm:$0xff]
        %v1110 = vld [vmem:[%s4 + $0x10] sm:$0xff]
        %v1111 = vld [vmem:[%s4 + $0x18] sm:$0xff]
        %v1112 = vsel %vm532, %v1103, 0
        %1114 = vmatpush.msra.mxu0 0.0
        %1115 = vmatpush.msra.mxu0 0.0
        %1116 = vmatpush.msra.mxu0 0.0
        %1117 = vmatpush.msra.mxu0 0.0
        %1118 = vmatpush.msra.mxu0 0.0
        %1119 = vmatpush.msra.mxu0 0.0
        %1120 = vmatpush.msra.mxu0 0.0
        %1121 = vmatpush.msra.mxu0 0.0
        %1122 = vmatpush.msra.mxu0 0.0
        %1123 = vmatpush.msra.mxu0 0.0
        %1124 = vmatpush.msra.mxu0 0.0
        %1125 = vmatpush.msra.mxu0 0.0
        %1126 = vmatpush.msra.mxu0 %v1111
        %1127 = vmatpush.msra.mxu0 %v1110
        %1128 = vmatpush.msra.mxu0 %v1109
        %1129 = vmatpush.msra.mxu0 %v1108
        %1130 = vmatmul.f32.gmra.mxu0 %v1112
        %v1131 = vpop.f32.mrf.mxu0
        %v1132 = vadd.f32 0.0, %v1131
        %1133 = vdwg.mxu0
        %v1134 = vadd.f32 %v1107, %v1132
        %v1135 = vxor.u32 %v1134, 2147483648
        %v1136 = vmul.f32 %v1135, 1.442695
        %v1137 = vpow.pop %v1136
        %v1138 = vadd.f32 %v1137, 1.0
        %v1139 = vrcp.pop %v1138
        %v1140 = vmul.f32 %v1138, %v1139
        %v1141 = vsub.f32 1.0, %v1140
        %v1142 = vmul.f32 %v1139, %v1141
        %v1143 = vadd.f32 %v1139, %v1142
        %vm1144 = vweird.f32 %v1138
        %vm1145 = vweird.f32 %v1139
        %vm1146 = vmor %vm1144, %vm1145
        %v1147 = vsel %vm1146, %v1139, %v1143
        %v1148 = vand.u32 2147483647, %v1138
        %vm1149 = vcmp.eq.f32.partialorder %v1148, 8.507059e+37
        %v1150 = vand.u32 %v1138, 2147483648
        %v1151 = vor.u32 1.1754944e-38, %v1150
        %v1152 = vsel %vm1149, %v1151, %v1147
        %v1153 = vmul.f32 1.0, %v1152
        %v1154 = vtanh.pop %v1134
        %v1155 = vmul.f32 %v1153, %v1094
        %1157 = vrot.lane.b32.xlu0 %v1154, 32
        %v1158 = vpop.permute.xlu0 %1157
        %v1160 = vmul.f32 %v1153, %v1158
        %1162 = vrot.lane.b32.xlu0 %v1160, 32
        %v1163 = vpop.permute.xlu0 %1162
        %v1165 = vadd.f32 %v1155, %v1163
        %v1166 = vtanh.pop %v1165
        %1168 = vrot.lane.b32.xlu0 %v1166, 32
        %v1169 = vpop.permute.xlu0 %1168
        %v1171 = vmul.f32 %v1153, %v1169
        %1173 = vrot.lane.b32.xlu0 %v1171, 64
        %v1174 = vpop.permute.xlu0 %1173
        %s1176 = scalar_lea.vmem %s322, 64 [#allocation5]
        %1177 = vst.msk [vmem:[%s1176] sm:$0xff] %vm532, %v1174
        %s1178 = scalar_lea.vmem [#allocation2], 72
        %v1179 = vld [vmem:[%s1178] sm:$0xff]
        %v1180 = vld [vmem:[%s4] sm:$0xff]
        %v1181 = vld [vmem:[%s4 + $0x8] sm:$0xff]
        %v1182 = vld [vmem:[%s4 + $0x10] sm:$0xff]
        %v1183 = vld [vmem:[%s4 + $0x18] sm:$0xff]
        %v1184 = vsel %vm532, %v1174, 0
        %1186 = vmatpush.msra.mxu0 0.0
        %1187 = vmatpush.msra.mxu0 0.0
        %1188 = vmatpush.msra.mxu0 0.0
        %1189 = vmatpush.msra.mxu0 0.0
        %1190 = vmatpush.msra.mxu0 0.0
        %1191 = vmatpush.msra.mxu0 0.0
        %1192 = vmatpush.msra.mxu0 0.0
        %1193 = vmatpush.msra.mxu0 0.0
        %1194 = vmatpush.msra.mxu0 0.0
        %1195 = vmatpush.msra.mxu0 0.0
        %1196 = vmatpush.msra.mxu0 0.0
        %1197 = vmatpush.msra.mxu0 0.0
        %1198 = vmatpush.msra.mxu0 %v1183
        %1199 = vmatpush.msra.mxu0 %v1182
        %1200 = vmatpush.msra.mxu0 %v1181
        %1201 = vmatpush.msra.mxu0 %v1180
        %1202 = vmatmul.f32.gmra.mxu0 %v1184
        %v1203 = vpop.f32.mrf.mxu0
        %v1204 = vadd.f32 0.0, %v1203
        %1205 = vdwg.mxu0
        %v1206 = vadd.f32 %v1179, %v1204
        %v1207 = vxor.u32 %v1206, 2147483648
        %v1208 = vmul.f32 %v1207, 1.442695
        %v1209 = vpow.pop %v1208
        %v1210 = vadd.f32 %v1209, 1.0
        %v1211 = vrcp.pop %v1210
        %v1212 = vmul.f32 %v1210, %v1211
        %v1213 = vsub.f32 1.0, %v1212
        %v1214 = vmul.f32 %v1211, %v1213
        %v1215 = vadd.f32 %v1211, %v1214
        %vm1216 = vweird.f32 %v1210
        %vm1217 = vweird.f32 %v1211
        %vm1218 = vmor %vm1216, %vm1217
        %v1219 = vsel %vm1218, %v1211, %v1215
        %v1220 = vand.u32 2147483647, %v1210
        %vm1221 = vcmp.eq.f32.partialorder %v1220, 8.507059e+37
        %v1222 = vand.u32 %v1210, 2147483648
        %v1223 = vor.u32 1.1754944e-38, %v1222
        %v1224 = vsel %vm1221, %v1223, %v1219
        %v1225 = vmul.f32 1.0, %v1224
        %v1226 = vtanh.pop %v1206
        %v1227 = vmul.f32 %v1225, %v1165
        %1229 = vrot.lane.b32.xlu0 %v1226, 32
        %v1230 = vpop.permute.xlu0 %1229
        %v1232 = vmul.f32 %v1225, %v1230
        %1234 = vrot.lane.b32.xlu0 %v1232, 32
        %v1235 = vpop.permute.xlu0 %1234
        %v1237 = vadd.f32 %v1227, %v1235
        %v1238 = vtanh.pop %v1237
        %1240 = vrot.lane.b32.xlu0 %v1238, 32
        %v1241 = vpop.permute.xlu0 %1240
        %v1243 = vmul.f32 %v1225, %v1241
        %1245 = vrot.lane.b32.xlu0 %v1243, 64
        %v1246 = vpop.permute.xlu0 %1245
        %s1248 = scalar_lea.vmem %s322, 72 [#allocation5]
        %1249 = vst.msk [vmem:[%s1248] sm:$0xff] %vm532, %v1246
        %s1250 = scalar_lea.vmem [#allocation2], 80
        %v1251 = vld [vmem:[%s1250] sm:$0xff]
        %v1252 = vld [vmem:[%s4] sm:$0xff]
        %v1253 = vld [vmem:[%s4 + $0x8] sm:$0xff]
        %v1254 = vld [vmem:[%s4 + $0x10] sm:$0xff]
        %v1255 = vld [vmem:[%s4 + $0x18] sm:$0xff]
        %v1256 = vsel %vm532, %v1246, 0
        %1258 = vmatpush.msra.mxu0 0.0
        %1259 = vmatpush.msra.mxu0 0.0
        %1260 = vmatpush.msra.mxu0 0.0
        %1261 = vmatpush.msra.mxu0 0.0
        %1262 = vmatpush.msra.mxu0 0.0
        %1263 = vmatpush.msra.mxu0 0.0
        %1264 = vmatpush.msra.mxu0 0.0
        %1265 = vmatpush.msra.mxu0 0.0
        %1266 = vmatpush.msra.mxu0 0.0
        %1267 = vmatpush.msra.mxu0 0.0
        %1268 = vmatpush.msra.mxu0 0.0
        %1269 = vmatpush.msra.mxu0 0.0
        %1270 = vmatpush.msra.mxu0 %v1255
        %1271 = vmatpush.msra.mxu0 %v1254
        %1272 = vmatpush.msra.mxu0 %v1253
        %1273 = vmatpush.msra.mxu0 %v1252
        %1274 = vmatmul.f32.gmra.mxu0 %v1256
        %v1275 = vpop.f32.mrf.mxu0
        %v1276 = vadd.f32 0.0, %v1275
        %1277 = vdwg.mxu0
        %v1278 = vadd.f32 %v1251, %v1276
        %v1279 = vxor.u32 %v1278, 2147483648
        %v1280 = vmul.f32 %v1279, 1.442695
        %v1281 = vpow.pop %v1280
        %v1282 = vadd.f32 %v1281, 1.0
        %v1283 = vrcp.pop %v1282
        %v1284 = vmul.f32 %v1282, %v1283
        %v1285 = vsub.f32 1.0, %v1284
        %v1286 = vmul.f32 %v1283, %v1285
        %v1287 = vadd.f32 %v1283, %v1286
        %vm1288 = vweird.f32 %v1282
        %vm1289 = vweird.f32 %v1283
        %vm1290 = vmor %vm1288, %vm1289
        %v1291 = vsel %vm1290, %v1283, %v1287
        %v1292 = vand.u32 2147483647, %v1282
        %vm1293 = vcmp.eq.f32.partialorder %v1292, 8.507059e+37
        %v1294 = vand.u32 %v1282, 2147483648
        %v1295 = vor.u32 1.1754944e-38, %v1294
        %v1296 = vsel %vm1293, %v1295, %v1291
        %v1297 = vmul.f32 1.0, %v1296
        %v1298 = vtanh.pop %v1278
        %v1299 = vmul.f32 %v1297, %v1237
        %1301 = vrot.lane.b32.xlu0 %v1298, 32
        %v1302 = vpop.permute.xlu0 %1301
        %v1304 = vmul.f32 %v1297, %v1302
        %1306 = vrot.lane.b32.xlu0 %v1304, 32
        %v1307 = vpop.permute.xlu0 %1306
        %v1309 = vadd.f32 %v1299, %v1307
        %v1310 = vtanh.pop %v1309
        %1312 = vrot.lane.b32.xlu0 %v1310, 32
        %v1313 = vpop.permute.xlu0 %1312
        %v1315 = vmul.f32 %v1297, %v1313
        %1317 = vrot.lane.b32.xlu0 %v1315, 64
        %v1318 = vpop.permute.xlu0 %1317
        %s1320 = scalar_lea.vmem %s322, 80 [#allocation5]
        %1321 = vst.msk [vmem:[%s1320] sm:$0xff] %vm532, %v1318
        %s1322 = scalar_lea.vmem [#allocation2], 88
        %v1323 = vld [vmem:[%s1322] sm:$0xff]
        %v1324 = vld [vmem:[%s4] sm:$0xff]
        %v1325 = vld [vmem:[%s4 + $0x8] sm:$0xff]
        %v1326 = vld [vmem:[%s4 + $0x10] sm:$0xff]
        %v1327 = vld [vmem:[%s4 + $0x18] sm:$0xff]
        %v1328 = vsel %vm532, %v1318, 0
        %1330 = vmatpush.msra.mxu0 0.0
        %1331 = vmatpush.msra.mxu0 0.0
        %1332 = vmatpush.msra.mxu0 0.0
        %1333 = vmatpush.msra.mxu0 0.0
        %1334 = vmatpush.msra.mxu0 0.0
        %1335 = vmatpush.msra.mxu0 0.0
        %1336 = vmatpush.msra.mxu0 0.0
        %1337 = vmatpush.msra.mxu0 0.0
        %1338 = vmatpush.msra.mxu0 0.0
        %1339 = vmatpush.msra.mxu0 0.0
        %1340 = vmatpush.msra.mxu0 0.0
        %1341 = vmatpush.msra.mxu0 0.0
        %1342 = vmatpush.msra.mxu0 %v1327
        %1343 = vmatpush.msra.mxu0 %v1326
        %1344 = vmatpush.msra.mxu0 %v1325
        %1345 = vmatpush.msra.mxu0 %v1324
        %1346 = vmatmul.f32.gmra.mxu0 %v1328
        %v1347 = vpop.f32.mrf.mxu0
        %v1348 = vadd.f32 0.0, %v1347
        %1349 = vdwg.mxu0
        %v1350 = vadd.f32 %v1323, %v1348
        %v1351 = vxor.u32 %v1350, 2147483648
        %v1352 = vmul.f32 %v1351, 1.442695
        %v1353 = vpow.pop %v1352
        %v1354 = vadd.f32 %v1353, 1.0
        %v1355 = vrcp.pop %v1354
        %v1356 = vmul.f32 %v1354, %v1355
        %v1357 = vsub.f32 1.0, %v1356
        %v1358 = vmul.f32 %v1355, %v1357
        %v1359 = vadd.f32 %v1355, %v1358
        %vm1360 = vweird.f32 %v1354
        %vm1361 = vweird.f32 %v1355
        %vm1362 = vmor %vm1360, %vm1361
        %v1363 = vsel %vm1362, %v1355, %v1359
        %v1364 = vand.u32 2147483647, %v1354
        %vm1365 = vcmp.eq.f32.partialorder %v1364, 8.507059e+37
        %v1366 = vand.u32 %v1354, 2147483648
        %v1367 = vor.u32 1.1754944e-38, %v1366
        %v1368 = vsel %vm1365, %v1367, %v1363
        %v1369 = vmul.f32 1.0, %v1368
        %v1370 = vtanh.pop %v1350
        %v1371 = vmul.f32 %v1369, %v1309
        %1373 = vrot.lane.b32.xlu0 %v1370, 32
        %v1374 = vpop.permute.xlu0 %1373
        %v1376 = vmul.f32 %v1369, %v1374
        %1378 = vrot.lane.b32.xlu0 %v1376, 32
        %v1379 = vpop.permute.xlu0 %1378
        %v1381 = vadd.f32 %v1371, %v1379
        %v1382 = vtanh.pop %v1381
        %1384 = vrot.lane.b32.xlu0 %v1382, 32
        %v1385 = vpop.permute.xlu0 %1384
        %v1387 = vmul.f32 %v1369, %v1385
        %1389 = vrot.lane.b32.xlu0 %v1387, 64
        %v1390 = vpop.permute.xlu0 %1389
        %s1392 = scalar_lea.vmem %s322, 88 [#allocation5]
        %1393 = vst.msk [vmem:[%s1392] sm:$0xff] %vm532, %v1390
        %s1394 = scalar_lea.vmem [#allocation2], 96
        %v1395 = vld [vmem:[%s1394] sm:$0xff]
        %v1396 = vld [vmem:[%s4] sm:$0xff]
        %v1397 = vld [vmem:[%s4 + $0x8] sm:$0xff]
        %v1398 = vld [vmem:[%s4 + $0x10] sm:$0xff]
        %v1399 = vld [vmem:[%s4 + $0x18] sm:$0xff]
        %v1400 = vsel %vm532, %v1390, 0
        %1402 = vmatpush.msra.mxu0 0.0
        %1403 = vmatpush.msra.mxu0 0.0
        %1404 = vmatpush.msra.mxu0 0.0
        %1405 = vmatpush.msra.mxu0 0.0
        %1406 = vmatpush.msra.mxu0 0.0
        %1407 = vmatpush.msra.mxu0 0.0
        %1408 = vmatpush.msra.mxu0 0.0
        %1409 = vmatpush.msra.mxu0 0.0
        %1410 = vmatpush.msra.mxu0 0.0
        %1411 = vmatpush.msra.mxu0 0.0
        %1412 = vmatpush.msra.mxu0 0.0
        %1413 = vmatpush.msra.mxu0 0.0
        %1414 = vmatpush.msra.mxu0 %v1399
        %1415 = vmatpush.msra.mxu0 %v1398
        %1416 = vmatpush.msra.mxu0 %v1397
        %1417 = vmatpush.msra.mxu0 %v1396
        %1418 = vmatmul.f32.gmra.mxu0 %v1400
        %v1419 = vpop.f32.mrf.mxu0
        %v1420 = vadd.f32 0.0, %v1419
        %1421 = vdwg.mxu0
        %v1422 = vadd.f32 %v1395, %v1420
        %v1423 = vxor.u32 %v1422, 2147483648
        %v1424 = vmul.f32 %v1423, 1.442695
        %v1425 = vpow.pop %v1424
        %v1426 = vadd.f32 %v1425, 1.0
        %v1427 = vrcp.pop %v1426
        %v1428 = vmul.f32 %v1426, %v1427
        %v1429 = vsub.f32 1.0, %v1428
        %v1430 = vmul.f32 %v1427, %v1429
        %v1431 = vadd.f32 %v1427, %v1430
        %vm1432 = vweird.f32 %v1426
        %vm1433 = vweird.f32 %v1427
        %vm1434 = vmor %vm1432, %vm1433
        %v1435 = vsel %vm1434, %v1427, %v1431
        %v1436 = vand.u32 2147483647, %v1426
        %vm1437 = vcmp.eq.f32.partialorder %v1436, 8.507059e+37
        %v1438 = vand.u32 %v1426, 2147483648
        %v1439 = vor.u32 1.1754944e-38, %v1438
        %v1440 = vsel %vm1437, %v1439, %v1435
        %v1441 = vmul.f32 1.0, %v1440
        %v1442 = vtanh.pop %v1422
        %v1443 = vmul.f32 %v1441, %v1381
        %1445 = vrot.lane.b32.xlu0 %v1442, 32
        %v1446 = vpop.permute.xlu0 %1445
        %v1448 = vmul.f32 %v1441, %v1446
        %1450 = vrot.lane.b32.xlu0 %v1448, 32
        %v1451 = vpop.permute.xlu0 %1450
        %v1453 = vadd.f32 %v1443, %v1451
        %v1454 = vtanh.pop %v1453
        %1456 = vrot.lane.b32.xlu0 %v1454, 32
        %v1457 = vpop.permute.xlu0 %1456
        %v1459 = vmul.f32 %v1441, %v1457
        %1461 = vrot.lane.b32.xlu0 %v1459, 64
        %v1462 = vpop.permute.xlu0 %1461
        %s1464 = scalar_lea.vmem %s322, 96 [#allocation5]
        %1465 = vst.msk [vmem:[%s1464] sm:$0xff] %vm532, %v1462
        %s1466 = scalar_lea.vmem [#allocation2], 104
        %v1467 = vld [vmem:[%s1466] sm:$0xff]
        %v1468 = vld [vmem:[%s4] sm:$0xff]
        %v1469 = vld [vmem:[%s4 + $0x8] sm:$0xff]
        %v1470 = vld [vmem:[%s4 + $0x10] sm:$0xff]
        %v1471 = vld [vmem:[%s4 + $0x18] sm:$0xff]
        %v1472 = vsel %vm532, %v1462, 0
        %1474 = vmatpush.msra.mxu0 0.0
        %1475 = vmatpush.msra.mxu0 0.0
        %1476 = vmatpush.msra.mxu0 0.0
        %1477 = vmatpush.msra.mxu0 0.0
        %1478 = vmatpush.msra.mxu0 0.0
        %1479 = vmatpush.msra.mxu0 0.0
        %1480 = vmatpush.msra.mxu0 0.0
        %1481 = vmatpush.msra.mxu0 0.0
        %1482 = vmatpush.msra.mxu0 0.0
        %1483 = vmatpush.msra.mxu0 0.0
        %1484 = vmatpush.msra.mxu0 0.0
        %1485 = vmatpush.msra.mxu0 0.0
        %1486 = vmatpush.msra.mxu0 %v1471
        %1487 = vmatpush.msra.mxu0 %v1470
        %1488 = vmatpush.msra.mxu0 %v1469
        %1489 = vmatpush.msra.mxu0 %v1468
        %1490 = vmatmul.f32.gmra.mxu0 %v1472
        %v1491 = vpop.f32.mrf.mxu0
        %v1492 = vadd.f32 0.0, %v1491
        %1493 = vdwg.mxu0
        %v1494 = vadd.f32 %v1467, %v1492
        %v1495 = vxor.u32 %v1494, 2147483648
        %v1496 = vmul.f32 %v1495, 1.442695
        %v1497 = vpow.pop %v1496
        %v1498 = vadd.f32 %v1497, 1.0
        %v1499 = vrcp.pop %v1498
        %v1500 = vmul.f32 %v1498, %v1499
        %v1501 = vsub.f32 1.0, %v1500
        %v1502 = vmul.f32 %v1499, %v1501
        %v1503 = vadd.f32 %v1499, %v1502
        %vm1504 = vweird.f32 %v1498
        %vm1505 = vweird.f32 %v1499
        %vm1506 = vmor %vm1504, %vm1505
        %v1507 = vsel %vm1506, %v1499, %v1503
        %v1508 = vand.u32 2147483647, %v1498
        %vm1509 = vcmp.eq.f32.partialorder %v1508, 8.507059e+37
        %v1510 = vand.u32 %v1498, 2147483648
        %v1511 = vor.u32 1.1754944e-38, %v1510
        %v1512 = vsel %vm1509, %v1511, %v1507
        %v1513 = vmul.f32 1.0, %v1512
        %v1514 = vtanh.pop %v1494
        %v1515 = vmul.f32 %v1513, %v1453
        %1517 = vrot.lane.b32.xlu0 %v1514, 32
        %v1518 = vpop.permute.xlu0 %1517
        %v1520 = vmul.f32 %v1513, %v1518
        %1522 = vrot.lane.b32.xlu0 %v1520, 32
        %v1523 = vpop.permute.xlu0 %1522
        %v1525 = vadd.f32 %v1515, %v1523
        %v1526 = vtanh.pop %v1525
        %1528 = vrot.lane.b32.xlu0 %v1526, 32
        %v1529 = vpop.permute.xlu0 %1528
        %v1531 = vmul.f32 %v1513, %v1529
        %1533 = vrot.lane.b32.xlu0 %v1531, 64
        %v1534 = vpop.permute.xlu0 %1533
        %s1536 = scalar_lea.vmem %s322, 104 [#allocation5]
        %1537 = vst.msk [vmem:[%s1536] sm:$0xff] %vm532, %v1534
        %s1538 = scalar_lea.vmem [#allocation2], 112
        %v1539 = vld [vmem:[%s1538] sm:$0xff]
        %v1540 = vld [vmem:[%s4] sm:$0xff]
        %v1541 = vld [vmem:[%s4 + $0x8] sm:$0xff]
        %v1542 = vld [vmem:[%s4 + $0x10] sm:$0xff]
        %v1543 = vld [vmem:[%s4 + $0x18] sm:$0xff]
        %v1544 = vsel %vm532, %v1534, 0
        %1546 = vmatpush.msra.mxu0 0.0
        %1547 = vmatpush.msra.mxu0 0.0
        %1548 = vmatpush.msra.mxu0 0.0
        %1549 = vmatpush.msra.mxu0 0.0
        %1550 = vmatpush.msra.mxu0 0.0
        %1551 = vmatpush.msra.mxu0 0.0
        %1552 = vmatpush.msra.mxu0 0.0
        %1553 = vmatpush.msra.mxu0 0.0
        %1554 = vmatpush.msra.mxu0 0.0
        %1555 = vmatpush.msra.mxu0 0.0
        %1556 = vmatpush.msra.mxu0 0.0
        %1557 = vmatpush.msra.mxu0 0.0
        %1558 = vmatpush.msra.mxu0 %v1543
        %1559 = vmatpush.msra.mxu0 %v1542
        %1560 = vmatpush.msra.mxu0 %v1541
        %1561 = vmatpush.msra.mxu0 %v1540
        %1562 = vmatmul.f32.gmra.mxu0 %v1544
        %v1563 = vpop.f32.mrf.mxu0
        %v1564 = vadd.f32 0.0, %v1563
        %1565 = vdwg.mxu0
        %v1566 = vadd.f32 %v1539, %v1564
        %v1567 = vxor.u32 %v1566, 2147483648
        %v1568 = vmul.f32 %v1567, 1.442695
        %v1569 = vpow.pop %v1568
        %v1570 = vadd.f32 %v1569, 1.0
        %v1571 = vrcp.pop %v1570
        %v1572 = vmul.f32 %v1570, %v1571
        %v1573 = vsub.f32 1.0, %v1572
        %v1574 = vmul.f32 %v1571, %v1573
        %v1575 = vadd.f32 %v1571, %v1574
        %vm1576 = vweird.f32 %v1570
        %vm1577 = vweird.f32 %v1571
        %vm1578 = vmor %vm1576, %vm1577
        %v1579 = vsel %vm1578, %v1571, %v1575
        %v1580 = vand.u32 2147483647, %v1570
        %vm1581 = vcmp.eq.f32.partialorder %v1580, 8.507059e+37
        %v1582 = vand.u32 %v1570, 2147483648
        %v1583 = vor.u32 1.1754944e-38, %v1582
        %v1584 = vsel %vm1581, %v1583, %v1579
        %v1585 = vmul.f32 1.0, %v1584
        %v1586 = vtanh.pop %v1566
        %v1587 = vmul.f32 %v1585, %v1525
        %1589 = vrot.lane.b32.xlu0 %v1586, 32
        %v1590 = vpop.permute.xlu0 %1589
        %v1592 = vmul.f32 %v1585, %v1590
        %1594 = vrot.lane.b32.xlu0 %v1592, 32
        %v1595 = vpop.permute.xlu0 %1594
        %v1597 = vadd.f32 %v1587, %v1595
        %v1598 = vtanh.pop %v1597
        %1600 = vrot.lane.b32.xlu0 %v1598, 32
        %v1601 = vpop.permute.xlu0 %1600
        %v1603 = vmul.f32 %v1585, %v1601
        %1605 = vrot.lane.b32.xlu0 %v1603, 64
        %v1606 = vpop.permute.xlu0 %1605
        %s1608 = scalar_lea.vmem %s322, 112 [#allocation5]
        %1609 = vst.msk [vmem:[%s1608] sm:$0xff] %vm532, %v1606
        %s1610 = scalar_lea.vmem [#allocation2], 120
        %v1611 = vld [vmem:[%s1610] sm:$0xff]
        %v1612 = vld [vmem:[%s4] sm:$0xff]
        %v1613 = vld [vmem:[%s4 + $0x8] sm:$0xff]
        %v1614 = vld [vmem:[%s4 + $0x10] sm:$0xff]
        %v1615 = vld [vmem:[%s4 + $0x18] sm:$0xff]
        %v1616 = vsel %vm532, %v1606, 0
        %1618 = vmatpush.msra.mxu0 0.0
        %1619 = vmatpush.msra.mxu0 0.0
        %1620 = vmatpush.msra.mxu0 0.0
        %1621 = vmatpush.msra.mxu0 0.0
        %1622 = vmatpush.msra.mxu0 0.0
        %1623 = vmatpush.msra.mxu0 0.0
        %1624 = vmatpush.msra.mxu0 0.0
        %1625 = vmatpush.msra.mxu0 0.0
        %1626 = vmatpush.msra.mxu0 0.0
        %1627 = vmatpush.msra.mxu0 0.0
        %1628 = vmatpush.msra.mxu0 0.0
        %1629 = vmatpush.msra.mxu0 0.0
        %1630 = vmatpush.msra.mxu0 %v1615
        %1631 = vmatpush.msra.mxu0 %v1614
        %1632 = vmatpush.msra.mxu0 %v1613
        %1633 = vmatpush.msra.mxu0 %v1612
        %1634 = vmatmul.f32.gmra.mxu0 %v1616
        %v1635 = vpop.f32.mrf.mxu0
        %v1636 = vadd.f32 0.0, %v1635
        %1637 = vdwg.mxu0
        %v1638 = vadd.f32 %v1611, %v1636
        %v1639 = vxor.u32 %v1638, 2147483648
        %v1640 = vmul.f32 %v1639, 1.442695
        %v1641 = vpow.pop %v1640
        %v1642 = vadd.f32 %v1641, 1.0
        %v1643 = vrcp.pop %v1642
        %v1644 = vmul.f32 %v1642, %v1643
        %v1645 = vsub.f32 1.0, %v1644
        %v1646 = vmul.f32 %v1643, %v1645
        %v1647 = vadd.f32 %v1643, %v1646
        %vm1648 = vweird.f32 %v1642
        %vm1649 = vweird.f32 %v1643
        %vm1650 = vmor %vm1648, %vm1649
        %v1651 = vsel %vm1650, %v1643, %v1647
        %v1652 = vand.u32 2147483647, %v1642
        %vm1653 = vcmp.eq.f32.partialorder %v1652, 8.507059e+37
        %v1654 = vand.u32 %v1642, 2147483648
        %v1655 = vor.u32 1.1754944e-38, %v1654
        %v1656 = vsel %vm1653, %v1655, %v1651
        %v1657 = vmul.f32 1.0, %v1656
        %v1658 = vtanh.pop %v1638
        %v1659 = vmul.f32 %v1657, %v1597
        %1661 = vrot.lane.b32.xlu0 %v1658, 32
        %v1662 = vpop.permute.xlu0 %1661
        %v1664 = vmul.f32 %v1657, %v1662
        %1666 = vrot.lane.b32.xlu0 %v1664, 32
        %v1667 = vpop.permute.xlu0 %1666
        %v1669 = vadd.f32 %v1659, %v1667
        %v1670 = vtanh.pop %v1669
        %1672 = vrot.lane.b32.xlu0 %v1670, 32
        %v1673 = vpop.permute.xlu0 %1672
        %v1675 = vmul.f32 %v1657, %v1673
        %1677 = vrot.lane.b32.xlu0 %v1675, 64
        %v1678 = vpop.permute.xlu0 %1677
        %s1680 = scalar_lea.vmem %s322, 120 [#allocation5]
        %1681 = vst.msk [vmem:[%s1680] sm:$0xff] %vm532, %v1678
        %1682 = vst.msk [vmem:[#allocation3] sm:$0xff] %vm532, %v1678
        %1684 = vrot.lane.b32.xlu0 %v1669, 96
        %v1685 = vpop.permute.xlu0 %1684
        %1687 = vst.msk [vmem:[#allocation4] sm:$0xff] %vm532, %v1685
        %1688 = vst.msk [vmem:[#allocation7] sm:$0xff] %vm532, %v1685
        %s1689 = sand.u32 %s188, 1
        %s1690 = scalar_lea.sflag [#allocation6], %s1689
        %s1691 = sand.u32 %s188, 1
        %s1692 = smul.addr %s1691, 128
        %s1693 = scalar_lea.vmem [#allocation5], %s1692
        // Predicated region
        $region49: #{tpu_custom_call.1} parent=43 // pred_check
          %p1694 = pneg %p198
        $region50: #{tpu_custom_call.1} parent=43 // pred_check_branch
          %1696 = sbr.rel (%p1694) target = $region52
        $region51: #{tpu_custom_call.1} parent=43 // pred_region
          %s1697 = smul.u32 16, %s28
          %1699 = vsyncadd %s1690, 0
          %s1700 = sadd.s32 %s27, %s1697
          %s1701 = smul.addr %s1700, 8
          %s1702 = scalar_lea.hbm %s6, %s1701
          %s1703 = sshll.u32 %s1693, 4
          %s1704 = int_to_ptr.vmem [resolvable:$true] %s1703
          %s1705 = sshll.u32 %s1702, 4
          %s1706 = int_to_ptr.hbm [resolvable:$true] %s1705
          %1711 = dma.vmem_to_hbm [thread:$0]  %s1704, 2048, %s1706, %s1690, 128, 128, 8
        $region52: #{tpu_custom_call.1} parent=43 // pred_fallthru
          _
        // Predicated region
        $region53: #{tpu_custom_call.1} parent=43 // pred_check
          %p1712 = pneg %p224
        $region54: #{tpu_custom_call.1} parent=43 // pred_check_branch
          %1714 = sbr.rel (%p1712) target = $region56
        $region55: #{tpu_custom_call.1} parent=43 // pred_region
          %1716 = vsyncadd [#allocation8], 0
          %s1717 = smul.addr %s27, 8
          %s1718 = scalar_lea.hbm %s7, %s1717
          %s1720 = sshll.u32 [#allocation7], 4
          %s1721 = int_to_ptr.vmem [resolvable:$true] %s1720
          %s1722 = sshll.u32 %s1718, 4
          %s1723 = int_to_ptr.hbm [resolvable:$true] %s1722
          %1725 = dma.vmem_to_hbm [thread:$0]  %s1721, 128, %s1723, [#allocation8]
        $region56: #{tpu_custom_call.1} parent=43 // pred_fallthru
          _
        // Predicated region
        $region57: #{tpu_custom_call.1} parent=43 // pred_check
          %p1726 = pneg %p224
        $region58: #{tpu_custom_call.1} parent=43 // pred_check_branch
          %1728 = sbr.rel (%p1726) target = $region60
        $region59: #{tpu_custom_call.1} parent=43 // pred_region
          %1730 = dma.done [#allocation8], 128
        $region60: #{tpu_custom_call.1} parent=43 // pred_fallthru
          _
      $region44: #{tpu_custom_call.1} parent=5 // pred_fallthru
        _
      %p1731 = scmp.le.s32.totalorder 2, %s18
      // Predicated region
      $region61: #{tpu_custom_call.1} parent=5 // pred_check
        %p1732 = pneg %p1731
      $region62: #{tpu_custom_call.1} parent=5 // pred_check_branch
        %1734 = sbr.rel (%p1732) target = $region64
      $region63: #{tpu_custom_call.1} parent=5 // pred_region
        %s1735 = ssub.s32 %s18, 2
        // Predicated region
        $region65: #{tpu_custom_call.1} parent=63 // pred_check
          %p1736 = pneg %p204
        $region66: #{tpu_custom_call.1} parent=63 // pred_check_branch
          %1738 = sbr.rel (%p1736) target = $region68
        $region67: #{tpu_custom_call.1} parent=63 // pred_region
          %s1739 = sand.u32 %s189, 1
          %s1740 = scalar_lea.sflag [#allocation6], %s1739
          %s1741 = sand.u32 %s189, 1
          %s1742 = smul.addr %s1741, 128
          %s1743 = scalar_lea.vmem [#allocation5], %s1742
          %1745 = dma.done %s1740, 2048
        $region68: #{tpu_custom_call.1} parent=63 // pred_fallthru
          _
      $region64: #{tpu_custom_call.1} parent=5 // pred_fallthru
        _
    $region6: #{tpu_custom_call.1} parent=1 // loop_footer
      %s22 = sadd.s32 1, %s18
    $region7: #{tpu_custom_call.1} parent=1 // loop_footer_branch
      %17 = sbr.rel target = $region3
    $region8: #{tpu_custom_call.1} parent=1 // loop_exit
      _
    %1746 = vsyncpa [#allocation6], 1
    %s1747 = scalar_lea.sflag [#allocation6], 1
    %1748 = vsyncpa %s1747, 1
    %1749 = vsyncpa [#allocation8], 1

</llo_original>
